<compile_context>
chip_gen: v6e
topology: v6e:2x2x1
jax: 0.10.0
libtpu: 0.0.40
codegen_flags: <defaults>
</compile_context>

<pallas_src>
import functools

import jax
import jax.numpy as jnp
from jax import lax
from jax.experimental import pallas as pl
from jax.experimental.pallas import tpu as pltpu

EMBEDDING_DIM = 8
HIDDEN_DIM = 6
OLIGO_SET_SIZE = 20
NUM_TAGS = 2

HG = 32            # per-gate padded width: 4 gates * 32 = 128 lanes = one vreg row
OUT_LANES = 128    # lane-dense output width (>=128 -> unmasked stores)
BP_MIN = 8         # pad batch to at least 8 sublanes

# Kernel gate order [i, f, o, g]: the three sigmoid gates contiguous, tanh gate last.
# (PyTorch / the pure-JAX reference use [i, f, g, o]; weights are permuted in the wrapper.)
GATE_ORDER = (0, 1, 3, 2)


def lstm_tagger_kernel(x_ref, w_ih_ref, w_hh_ref, b_ref, w_diff_ref, b_diff_ref,
                       out_ref, gx_ref, hs_ref, *, seq_len, batch_p):
    """LSTM recurrence + 2-class tag head + log_softmax (padded, lane-packed shapes).

    x_ref      : (S*Bp, E)        f32  time-major, batch-padded, pre-flattened embeddings
    w_ih_ref   : (E, 4*HG)        f32  input->gates weights, gate order [i,f,o,g], zero-padded
    w_hh_ref   : (HG, 4*HG)       f32  hidden->gates weights, padded rows+cols are zero
    b_ref      : (1, 4*HG)        f32  combined bias (b_ih + b_hh), zero-padded
    w_diff_ref : (1, HG)          f32  w_out[1]-w_out[0], zero-padded
    b_diff_ref : (1, 1)           f32  b_out[1]-b_out[0]
    out_ref    : (S*Bp, 128)      f32  lane-dense log-softmax (lane0=class0, lane1=class1)
    gx_ref     : (S*Bp, 4*HG)     f32  scratch: precomputed input projection (+bias)
    hs_ref     : (S*Bp, HG)       f32  scratch: per-step hidden states
    """
    S, Bp = seq_len, batch_p

    # ---- (1) Input projection hoisted out of the recurrence: one MXU pass, bias folded ----
    gx_ref[...] = (jnp.dot(x_ref[...], w_ih_ref[...],
                           preferred_element_type=jnp.float32) + b_ref[...])

    # ---- (2) Serial recurrence: single (8 x 32) @ (32 x 128) MXU tile per step ----
    # Padded hidden lanes stay exactly 0: zero weight cols / zero bias -> gate preact 0,
    # so c_pad -> 0.5*c_pad (starts 0) and h_pad = 0.5*tanh(0) = 0.
    def step(t, carry):
        h, c = carry
        row = pl.multiple_of(t * Bp, Bp)                      # aligned dynamic sublane start
        gates = gx_ref[pl.ds(row, Bp), :] + jnp.dot(
            h, w_hh_ref[...], preferred_element_type=jnp.float32)   # (Bp, 128)
        sig = jax.nn.sigmoid(gates[:, 0:3 * HG])              # [i | f | o] in one slab
        i_g = sig[:, 0 * HG:1 * HG]
        f_g = sig[:, 1 * HG:2 * HG]
        o_g = sig[:, 2 * HG:3 * HG]
        g_g = jnp.tanh(gates[:, 3 * HG:4 * HG])
        c_new = f_g * c + i_g * g_g
        h_new = o_g * jnp.tanh(c_new)
        hs_ref[pl.ds(row, Bp), :] = h_new
        return (h_new, c_new)

    h0 = jnp.zeros((Bp, HG), jnp.float32)
    c0 = jnp.zeros((Bp, HG), jnp.float32)
    lax.fori_loop(0, S, step, (h0, c0), unroll=True)          # S static -> fully unrolled

    # ---- (3) Tag head + lane-dense 2-class log_softmax, hoisted out of the loop ----
    # d = logits[:,1] - logits[:,0] = hs @ (w1 - w0) + (b1 - b0); VPU mul + lane reduce.
    d = (jnp.sum(hs_ref[...] * w_diff_ref[...], axis=1, keepdims=True)
         + b_diff_ref[...])                                    # (S*Bp, 1)
    # log_softmax closed form: class0 -> -softplus(d), class1 -> -softplus(-d).
    lane = lax.broadcasted_iota(jnp.int32, out_ref.shape, 1)
    sign = jnp.where(lane == 0, jnp.float32(1.0), jnp.float32(-1.0))
    out_ref[...] = -jax.nn.softplus(d * sign)                  # dense 128-lane store


def _pad_gate_cols(w_t, h, hg):
    """(in_dim, 4h) [i,f,g,o] -> (in_dim, 4*hg) [i,f,o,g], each gate zero-padded to hg."""
    in_dim = w_t.shape[0]
    w4 = w_t.reshape(in_dim, 4, h)[:, GATE_ORDER, :]
    return jnp.pad(w4, ((0, 0), (0, 0), (0, hg - h))).reshape(in_dim, 4 * hg)


def init_params(key):
    """Deterministic parameter init matching the PyTorch module's shapes."""
    ks = jax.random.split(key, 7)
    emb = jax.random.normal(ks[0], (OLIGO_SET_SIZE, EMBEDDING_DIM), jnp.float32)
    s = 1.0 / jnp.sqrt(HIDDEN_DIM)
    w_ih = jax.random.uniform(ks[1], (4 * HIDDEN_DIM, EMBEDDING_DIM), jnp.float32, -s, s)
    w_hh = jax.random.uniform(ks[2], (4 * HIDDEN_DIM, HIDDEN_DIM), jnp.float32, -s, s)
    b_ih = jax.random.uniform(ks[3], (4 * HIDDEN_DIM,), jnp.float32, -s, s)
    b_hh = jax.random.uniform(ks[4], (4 * HIDDEN_DIM,), jnp.float32, -s, s)
    w_out = jax.random.uniform(ks[5], (NUM_TAGS, HIDDEN_DIM), jnp.float32, -s, s)
    b_out = jax.random.uniform(ks[6], (NUM_TAGS,), jnp.float32, -s, s)
    return dict(emb=emb, w_ih=w_ih, w_hh=w_hh, b_ih=b_ih, b_hh=b_hh,
                w_out=w_out, b_out=b_out)


@jax.jit
def lstm_tagger_forward(fragment, params):
    """fragment: (B, S) int32 token ids -> (B, S, 2) log-softmax tag scores."""
    B, S = fragment.shape
    H = HIDDEN_DIM
    Bp = max(B, BP_MIN)

    # Plain-JAX glue: time-major embedding gather, batch-pad, flatten to (S*Bp, E).
    x = jnp.take(params["emb"], fragment.T, axis=0).astype(jnp.float32)   # (S, B, E)
    if Bp != B:
        x = jnp.pad(x, ((0, 0), (0, Bp - B), (0, 0)))
    x_flat = x.reshape(S * Bp, EMBEDDING_DIM)

    # Weight prep (XLA side): gate reorder [i,f,o,g] + zero padding to 32 lanes/gate.
    w_ih_p = _pad_gate_cols(params["w_ih"].T, H, HG)                      # (E,  4*HG)
    w_hh_p = _pad_gate_cols(params["w_hh"].T, H, HG)                      # (H,  4*HG)
    w_hh_p = jnp.pad(w_hh_p, ((0, HG - H), (0, 0)))                       # (HG, 4*HG)
    b_p = _pad_gate_cols((params["b_ih"] + params["b_hh"]).reshape(1, -1), H, HG)  # (1, 4*HG)
    w_diff = (params["w_out"][1] - params["w_out"][0]).reshape(1, H)      # (1, H)
    w_diff = jnp.pad(w_diff, ((0, 0), (0, HG - H)))                       # (1, HG)
    b_diff = (params["b_out"][1] - params["b_out"][0]).reshape(1, 1)      # (1, 1)

    vmem = pl.BlockSpec(memory_space=pltpu.MemorySpace.VMEM)
    out_flat = pl.pallas_call(
        functools.partial(lstm_tagger_kernel, seq_len=S, batch_p=Bp),
        out_shape=jax.ShapeDtypeStruct((S * Bp, OUT_LANES), jnp.float32),
        in_specs=[vmem] * 6,
        out_specs=vmem,
        scratch_shapes=[pltpu.VMEM((S * Bp, 4 * HG), jnp.float32),   # gates_x (32 KiB @ S=8)
                        pltpu.VMEM((S * Bp, HG), jnp.float32)],      # hidden states
    )(x_flat, w_ih_p, w_hh_p, b_p, w_diff, b_diff)
    # TODO(synk): for long sequences / large batch, add a batch-parallel grid axis
    # (v7x has 2 TensorCores) and chunk the gx scratch over time; unnecessary at B=2, S=8.

    # Slice lane-dense output to the 2 real classes, drop batch padding, back to batch-first.
    out = out_flat[:, :NUM_TAGS].reshape(S, Bp, NUM_TAGS)[:, :B, :]
    return jnp.transpose(out, (1, 0, 2))                                 # (B, S, 2)


def reference_forward(fragment, params):
    """Pure-JAX reference of the PyTorch forward pass (for verification)."""
    embeds = jnp.take(params["emb"], fragment, axis=0)          # (B, S, E)
    B, S, E = embeds.shape
    H = HIDDEN_DIM
    w_ih_t = params["w_ih"].T
    w_hh_t = params["w_hh"].T
    b = params["b_ih"] + params["b_hh"]

    def cell(carry, x_t):
        h, c = carry
        gates = x_t @ w_ih_t + h @ w_hh_t + b
        i_g = jax.nn.sigmoid(gates[:, 0 * H:1 * H])
        f_g = jax.nn.sigmoid(gates[:, 1 * H:2 * H])
        g_g = jnp.tanh(gates[:, 2 * H:3 * H])
        o_g = jax.nn.sigmoid(gates[:, 3 * H:4 * H])
        c_new = f_g * c + i_g * g_g
        h_new = o_g * jnp.tanh(c_new)
        return (h_new, c_new), h_new

    h0 = jnp.zeros((B, H), jnp.float32)
    c0 = jnp.zeros((B, H), jnp.float32)
    _, hs = lax.scan(cell, (h0, c0), jnp.transpose(embeds, (1, 0, 2)))
    lstm_out = jnp.transpose(hs, (1, 0, 2))                      # (B, S, H)
    tag_space = lstm_out @ params["w_out"].T + params["b_out"]   # (B, S, 2)
    return jax.nn.log_softmax(tag_space, axis=2)


if __name__ == "__main__":
    key = jax.random.PRNGKey(0)
    k_params, k_frag = jax.random.split(key)
    params = init_params(k_params)

    batch, seq = 2, 8
    fragment = jax.random.randint(k_frag, (batch, seq), 0, OLIGO_SET_SIZE,
                                  dtype=jnp.int32)

    out = lstm_tagger_forward(fragment, params)
    out = jax.block_until_ready(out)

    ref = reference_forward(fragment, params)
    assert out.shape == (batch, seq, NUM_TAGS)
    assert jnp.allclose(out, ref, atol=1e-5, rtol=1e-5)

    print("KERNEL_OK")
</pallas_src>

<mosaic_0001>
module attributes {stable_mosaic.version = 11 : i64} {
  func.func @lstm_tagger_kernel(%arg0: memref<64x8xf32, #tpu.memory_space<vmem>>, %arg1: memref<8x128xf32, #tpu.memory_space<vmem>>, %arg2: memref<32x128xf32, #tpu.memory_space<vmem>>, %arg3: memref<1x128xf32, #tpu.memory_space<vmem>>, %arg4: memref<1x32xf32, #tpu.memory_space<vmem>>, %arg5: memref<1x1xf32, #tpu.memory_space<vmem>>, %arg6: memref<64x128xf32, #tpu.memory_space<vmem>>, %arg7: memref<64x128xf32, #tpu.memory_space<vmem>>, %arg8: memref<64x32xf32, #tpu.memory_space<vmem>>) attributes {dimension_semantics = [], scalar_prefetch = 0 : i64, scratch_operands = 2 : i64, tpu.core_type = #tpu.core_type<tc>} {
    %c0 = arith.constant 0 : index
    %c0_0 = arith.constant 0 : index
    %0 = vector.load %arg0[%c0, %c0_0] : memref<64x8xf32, #tpu.memory_space<vmem>>, vector<64x8xf32>
    %c0_1 = arith.constant 0 : index
    %c0_2 = arith.constant 0 : index
    %1 = vector.load %arg1[%c0_1, %c0_2] : memref<8x128xf32, #tpu.memory_space<vmem>>, vector<8x128xf32>
    %cst = arith.constant dense<0.000000e+00> : vector<64x128xf32>
    %2 = tpu.matmul %0, %1, %cst {dimension_numbers = #tpu.dot_dimension_numbers<[1], [0], [0], [1], [0, 0, 1, 1], [], []>} : vector<64x8xf32>, vector<8x128xf32>, vector<64x128xf32> -> vector<64x128xf32>
    %c0_3 = arith.constant 0 : index
    %c0_4 = arith.constant 0 : index
    %3 = vector.load %arg3[%c0_3, %c0_4] : memref<1x128xf32, #tpu.memory_space<vmem>>, vector<1x128xf32>
    %4 = vector.broadcast %3 : vector<1x128xf32> to vector<64x128xf32>
    %5 = arith.addf %2, %4 : vector<64x128xf32>
    %c0_5 = arith.constant 0 : index
    %c0_6 = arith.constant 0 : index
    %6 = vector.load %arg7[%c0_5, %c0_6] : memref<64x128xf32, #tpu.memory_space<vmem>>, vector<64x128xf32>
    tpu.vector_store %arg7[%c0_5, %c0_6], %5 {strides = array<i32>} : memref<64x128xf32, #tpu.memory_space<vmem>>, vector<64x128xf32>,
    %cst_7 = arith.constant 0.000000e+00 : f32
    %7 = vector.broadcast %cst_7 : f32 to vector<8x32xf32>
    %cst_8 = arith.constant 0.000000e+00 : f32
    %8 = vector.broadcast %cst_8 : f32 to vector<8x32xf32>
    %c0_i32 = arith.constant 0 : i32
    %c8_i32 = arith.constant 8 : i32
    %9 = arith.muli %c0_i32, %c8_i32 : i32
    %10 = tpu.assume_multiple %9, 8 : i32
    %11 = arith.index_cast %10 : i32 to index
    %c0_9 = arith.constant 0 : index
    %12 = vector.load %arg7[%11, %c0_9] : memref<64x128xf32, #tpu.memory_space<vmem>>, vector<8x128xf32>
    %c0_10 = arith.constant 0 : index
    %c0_11 = arith.constant 0 : index
    %13 = vector.load %arg2[%c0_10, %c0_11] : memref<32x128xf32, #tpu.memory_space<vmem>>, vector<32x128xf32>
    %cst_12 = arith.constant dense<0.000000e+00> : vector<8x128xf32>
    %14 = tpu.matmul %7, %13, %cst_12 {dimension_numbers = #tpu.dot_dimension_numbers<[1], [0], [0], [1], [0, 0, 1, 1], [], []>} : vector<8x32xf32>, vector<32x128xf32>, vector<8x128xf32> -> vector<8x128xf32>
    %15 = arith.addf %12, %14 : vector<8x128xf32>
    %16 = vector.extract_strided_slice %15 {offsets = [0, 0], sizes = [8, 96], strides = [1, 1]} : vector<8x128xf32> to vector<8x96xf32>
    %17 = arith.negf %16 : vector<8x96xf32>
    %18 = math.exp %17 : vector<8x96xf32>
    %cst_13 = arith.constant 1.000000e+00 : f32
    %19 = vector.broadcast %cst_13 : f32 to vector<8x96xf32>
    %20 = arith.addf %19, %18 : vector<8x96xf32>
    %21 = arith.divf %19, %20 : vector<8x96xf32>
    %22 = vector.extract_strided_slice %21 {offsets = [0, 0], sizes = [8, 32], strides = [1, 1]} : vector<8x96xf32> to vector<8x32xf32>
    %23 = vector.extract_strided_slice %21 {offsets = [0, 32], sizes = [8, 32], strides = [1, 1]} : vector<8x96xf32> to vector<8x32xf32>
    %24 = vector.extract_strided_slice %21 {offsets = [0, 64], sizes = [8, 32], strides = [1, 1]} : vector<8x96xf32> to vector<8x32xf32>
    %25 = vector.extract_strided_slice %15 {offsets = [0, 96], sizes = [8, 32], strides = [1, 1]} : vector<8x128xf32> to vector<8x32xf32>
    %26 = math.tanh %25 : vector<8x32xf32>
    %27 = arith.mulf %23, %8 : vector<8x32xf32>
    %28 = arith.mulf %22, %26 : vector<8x32xf32>
    %29 = arith.addf %27, %28 : vector<8x32xf32>
    %30 = math.tanh %29 : vector<8x32xf32>
    %31 = arith.mulf %24, %30 : vector<8x32xf32>
    %32 = arith.index_cast %10 : i32 to index
    %c0_14 = arith.constant 0 : index
    %33 = vector.load %arg8[%32, %c0_14] : memref<64x32xf32, #tpu.memory_space<vmem>>, vector<8x32xf32>
    tpu.vector_store %arg8[%32, %c0_14], %31 {strides = array<i32>} : memref<64x32xf32, #tpu.memory_space<vmem>>, vector<8x32xf32>,
    %c1_i32 = arith.constant 1 : i32
    %c8_i32_15 = arith.constant 8 : i32
    %34 = arith.muli %c1_i32, %c8_i32_15 : i32
    %35 = tpu.assume_multiple %34, 8 : i32
    %36 = arith.index_cast %35 : i32 to index
    %c0_16 = arith.constant 0 : index
    %37 = vector.load %arg7[%36, %c0_16] : memref<64x128xf32, #tpu.memory_space<vmem>>, vector<8x128xf32>
    %c0_17 = arith.constant 0 : index
    %c0_18 = arith.constant 0 : index
    %38 = vector.load %arg2[%c0_17, %c0_18] : memref<32x128xf32, #tpu.memory_space<vmem>>, vector<32x128xf32>
    %cst_19 = arith.constant dense<0.000000e+00> : vector<8x128xf32>
    %39 = tpu.matmul %31, %38, %cst_19 {dimension_numbers = #tpu.dot_dimension_numbers<[1], [0], [0], [1], [0, 0, 1, 1], [], []>} : vector<8x32xf32>, vector<32x128xf32>, vector<8x128xf32> -> vector<8x128xf32>
    %40 = arith.addf %37, %39 : vector<8x128xf32>
    %41 = vector.extract_strided_slice %40 {offsets = [0, 0], sizes = [8, 96], strides = [1, 1]} : vector<8x128xf32> to vector<8x96xf32>
    %42 = arith.negf %41 : vector<8x96xf32>
    %43 = math.exp %42 : vector<8x96xf32>
    %cst_20 = arith.constant 1.000000e+00 : f32
    %44 = vector.broadcast %cst_20 : f32 to vector<8x96xf32>
    %45 = arith.addf %44, %43 : vector<8x96xf32>
    %46 = arith.divf %44, %45 : vector<8x96xf32>
    %47 = vector.extract_strided_slice %46 {offsets = [0, 0], sizes = [8, 32], strides = [1, 1]} : vector<8x96xf32> to vector<8x32xf32>
    %48 = vector.extract_strided_slice %46 {offsets = [0, 32], sizes = [8, 32], strides = [1, 1]} : vector<8x96xf32> to vector<8x32xf32>
    %49 = vector.extract_strided_slice %46 {offsets = [0, 64], sizes = [8, 32], strides = [1, 1]} : vector<8x96xf32> to vector<8x32xf32>
    %50 = vector.extract_strided_slice %40 {offsets = [0, 96], sizes = [8, 32], strides = [1, 1]} : vector<8x128xf32> to vector<8x32xf32>
    %51 = math.tanh %50 : vector<8x32xf32>
    %52 = arith.mulf %48, %29 : vector<8x32xf32>
    %53 = arith.mulf %47, %51 : vector<8x32xf32>
    %54 = arith.addf %52, %53 : vector<8x32xf32>
    %55 = math.tanh %54 : vector<8x32xf32>
    %56 = arith.mulf %49, %55 : vector<8x32xf32>
    %57 = arith.index_cast %35 : i32 to index
    %c0_21 = arith.constant 0 : index
    %58 = vector.load %arg8[%57, %c0_21] : memref<64x32xf32, #tpu.memory_space<vmem>>, vector<8x32xf32>
    tpu.vector_store %arg8[%57, %c0_21], %56 {strides = array<i32>} : memref<64x32xf32, #tpu.memory_space<vmem>>, vector<8x32xf32>,
    %c2_i32 = arith.constant 2 : i32
    %c8_i32_22 = arith.constant 8 : i32
    %59 = arith.muli %c2_i32, %c8_i32_22 : i32
    %60 = tpu.assume_multiple %59, 8 : i32
    %61 = arith.index_cast %60 : i32 to index
    %c0_23 = arith.constant 0 : index
    %62 = vector.load %arg7[%61, %c0_23] : memref<64x128xf32, #tpu.memory_space<vmem>>, vector<8x128xf32>
    %c0_24 = arith.constant 0 : index
    %c0_25 = arith.constant 0 : index
    %63 = vector.load %arg2[%c0_24, %c0_25] : memref<32x128xf32, #tpu.memory_space<vmem>>, vector<32x128xf32>
    %cst_26 = arith.constant dense<0.000000e+00> : vector<8x128xf32>
    %64 = tpu.matmul %56, %63, %cst_26 {dimension_numbers = #tpu.dot_dimension_numbers<[1], [0], [0], [1], [0, 0, 1, 1], [], []>} : vector<8x32xf32>, vector<32x128xf32>, vector<8x128xf32> -> vector<8x128xf32>
    %65 = arith.addf %62, %64 : vector<8x128xf32>
    %66 = vector.extract_strided_slice %65 {offsets = [0, 0], sizes = [8, 96], strides = [1, 1]} : vector<8x128xf32> to vector<8x96xf32>
    %67 = arith.negf %66 : vector<8x96xf32>
    %68 = math.exp %67 : vector<8x96xf32>
    %cst_27 = arith.constant 1.000000e+00 : f32
    %69 = vector.broadcast %cst_27 : f32 to vector<8x96xf32>
    %70 = arith.addf %69, %68 : vector<8x96xf32>
    %71 = arith.divf %69, %70 : vector<8x96xf32>
    %72 = vector.extract_strided_slice %71 {offsets = [0, 0], sizes = [8, 32], strides = [1, 1]} : vector<8x96xf32> to vector<8x32xf32>
    %73 = vector.extract_strided_slice %71 {offsets = [0, 32], sizes = [8, 32], strides = [1, 1]} : vector<8x96xf32> to vector<8x32xf32>
    %74 = vector.extract_strided_slice %71 {offsets = [0, 64], sizes = [8, 32], strides = [1, 1]} : vector<8x96xf32> to vector<8x32xf32>
    %75 = vector.extract_strided_slice %65 {offsets = [0, 96], sizes = [8, 32], strides = [1, 1]} : vector<8x128xf32> to vector<8x32xf32>
    %76 = math.tanh %75 : vector<8x32xf32>
    %77 = arith.mulf %73, %54 : vector<8x32xf32>
    %78 = arith.mulf %72, %76 : vector<8x32xf32>
    %79 = arith.addf %77, %78 : vector<8x32xf32>
    %80 = math.tanh %79 : vector<8x32xf32>
    %81 = arith.mulf %74, %80 : vector<8x32xf32>
    %82 = arith.index_cast %60 : i32 to index
    %c0_28 = arith.constant 0 : index
    %83 = vector.load %arg8[%82, %c0_28] : memref<64x32xf32, #tpu.memory_space<vmem>>, vector<8x32xf32>
    tpu.vector_store %arg8[%82, %c0_28], %81 {strides = array<i32>} : memref<64x32xf32, #tpu.memory_space<vmem>>, vector<8x32xf32>,
    %c3_i32 = arith.constant 3 : i32
    %c8_i32_29 = arith.constant 8 : i32
    %84 = arith.muli %c3_i32, %c8_i32_29 : i32
    %85 = tpu.assume_multiple %84, 8 : i32
    %86 = arith.index_cast %85 : i32 to index
    %c0_30 = arith.constant 0 : index
    %87 = vector.load %arg7[%86, %c0_30] : memref<64x128xf32, #tpu.memory_space<vmem>>, vector<8x128xf32>
    %c0_31 = arith.constant 0 : index
    %c0_32 = arith.constant 0 : index
    %88 = vector.load %arg2[%c0_31, %c0_32] : memref<32x128xf32, #tpu.memory_space<vmem>>, vector<32x128xf32>
    %cst_33 = arith.constant dense<0.000000e+00> : vector<8x128xf32>
    %89 = tpu.matmul %81, %88, %cst_33 {dimension_numbers = #tpu.dot_dimension_numbers<[1], [0], [0], [1], [0, 0, 1, 1], [], []>} : vector<8x32xf32>, vector<32x128xf32>, vector<8x128xf32> -> vector<8x128xf32>
    %90 = arith.addf %87, %89 : vector<8x128xf32>
    %91 = vector.extract_strided_slice %90 {offsets = [0, 0], sizes = [8, 96], strides = [1, 1]} : vector<8x128xf32> to vector<8x96xf32>
    %92 = arith.negf %91 : vector<8x96xf32>
    %93 = math.exp %92 : vector<8x96xf32>
    %cst_34 = arith.constant 1.000000e+00 : f32
    %94 = vector.broadcast %cst_34 : f32 to vector<8x96xf32>
    %95 = arith.addf %94, %93 : vector<8x96xf32>
    %96 = arith.divf %94, %95 : vector<8x96xf32>
    %97 = vector.extract_strided_slice %96 {offsets = [0, 0], sizes = [8, 32], strides = [1, 1]} : vector<8x96xf32> to vector<8x32xf32>
    %98 = vector.extract_strided_slice %96 {offsets = [0, 32], sizes = [8, 32], strides = [1, 1]} : vector<8x96xf32> to vector<8x32xf32>
    %99 = vector.extract_strided_slice %96 {offsets = [0, 64], sizes = [8, 32], strides = [1, 1]} : vector<8x96xf32> to vector<8x32xf32>
    %100 = vector.extract_strided_slice %90 {offsets = [0, 96], sizes = [8, 32], strides = [1, 1]} : vector<8x128xf32> to vector<8x32xf32>
    %101 = math.tanh %100 : vector<8x32xf32>
    %102 = arith.mulf %98, %79 : vector<8x32xf32>
    %103 = arith.mulf %97, %101 : vector<8x32xf32>
    %104 = arith.addf %102, %103 : vector<8x32xf32>
    %105 = math.tanh %104 : vector<8x32xf32>
    %106 = arith.mulf %99, %105 : vector<8x32xf32>
    %107 = arith.index_cast %85 : i32 to index
    %c0_35 = arith.constant 0 : index
    %108 = vector.load %arg8[%107, %c0_35] : memref<64x32xf32, #tpu.memory_space<vmem>>, vector<8x32xf32>
    tpu.vector_store %arg8[%107, %c0_35], %106 {strides = array<i32>} : memref<64x32xf32, #tpu.memory_space<vmem>>, vector<8x32xf32>,
    %c4_i32 = arith.constant 4 : i32
    %c8_i32_36 = arith.constant 8 : i32
    %109 = arith.muli %c4_i32, %c8_i32_36 : i32
    %110 = tpu.assume_multiple %109, 8 : i32
    %111 = arith.index_cast %110 : i32 to index
    %c0_37 = arith.constant 0 : index
    %112 = vector.load %arg7[%111, %c0_37] : memref<64x128xf32, #tpu.memory_space<vmem>>, vector<8x128xf32>
    %c0_38 = arith.constant 0 : index
    %c0_39 = arith.constant 0 : index
    %113 = vector.load %arg2[%c0_38, %c0_39] : memref<32x128xf32, #tpu.memory_space<vmem>>, vector<32x128xf32>
    %cst_40 = arith.constant dense<0.000000e+00> : vector<8x128xf32>
    %114 = tpu.matmul %106, %113, %cst_40 {dimension_numbers = #tpu.dot_dimension_numbers<[1], [0], [0], [1], [0, 0, 1, 1], [], []>} : vector<8x32xf32>, vector<32x128xf32>, vector<8x128xf32> -> vector<8x128xf32>
    %115 = arith.addf %112, %114 : vector<8x128xf32>
    %116 = vector.extract_strided_slice %115 {offsets = [0, 0], sizes = [8, 96], strides = [1, 1]} : vector<8x128xf32> to vector<8x96xf32>
    %117 = arith.negf %116 : vector<8x96xf32>
    %118 = math.exp %117 : vector<8x96xf32>
    %cst_41 = arith.constant 1.000000e+00 : f32
    %119 = vector.broadcast %cst_41 : f32 to vector<8x96xf32>
    %120 = arith.addf %119, %118 : vector<8x96xf32>
    %121 = arith.divf %119, %120 : vector<8x96xf32>
    %122 = vector.extract_strided_slice %121 {offsets = [0, 0], sizes = [8, 32], strides = [1, 1]} : vector<8x96xf32> to vector<8x32xf32>
    %123 = vector.extract_strided_slice %121 {offsets = [0, 32], sizes = [8, 32], strides = [1, 1]} : vector<8x96xf32> to vector<8x32xf32>
    %124 = vector.extract_strided_slice %121 {offsets = [0, 64], sizes = [8, 32], strides = [1, 1]} : vector<8x96xf32> to vector<8x32xf32>
    %125 = vector.extract_strided_slice %115 {offsets = [0, 96], sizes = [8, 32], strides = [1, 1]} : vector<8x128xf32> to vector<8x32xf32>
    %126 = math.tanh %125 : vector<8x32xf32>
    %127 = arith.mulf %123, %104 : vector<8x32xf32>
    %128 = arith.mulf %122, %126 : vector<8x32xf32>
    %129 = arith.addf %127, %128 : vector<8x32xf32>
    %130 = math.tanh %129 : vector<8x32xf32>
    %131 = arith.mulf %124, %130 : vector<8x32xf32>
    %132 = arith.index_cast %110 : i32 to index
    %c0_42 = arith.constant 0 : index
    %133 = vector.load %arg8[%132, %c0_42] : memref<64x32xf32, #tpu.memory_space<vmem>>, vector<8x32xf32>
    tpu.vector_store %arg8[%132, %c0_42], %131 {strides = array<i32>} : memref<64x32xf32, #tpu.memory_space<vmem>>, vector<8x32xf32>,
    %c5_i32 = arith.constant 5 : i32
    %c8_i32_43 = arith.constant 8 : i32
    %134 = arith.muli %c5_i32, %c8_i32_43 : i32
    %135 = tpu.assume_multiple %134, 8 : i32
    %136 = arith.index_cast %135 : i32 to index
    %c0_44 = arith.constant 0 : index
    %137 = vector.load %arg7[%136, %c0_44] : memref<64x128xf32, #tpu.memory_space<vmem>>, vector<8x128xf32>
    %c0_45 = arith.constant 0 : index
    %c0_46 = arith.constant 0 : index
    %138 = vector.load %arg2[%c0_45, %c0_46] : memref<32x128xf32, #tpu.memory_space<vmem>>, vector<32x128xf32>
    %cst_47 = arith.constant dense<0.000000e+00> : vector<8x128xf32>
    %139 = tpu.matmul %131, %138, %cst_47 {dimension_numbers = #tpu.dot_dimension_numbers<[1], [0], [0], [1], [0, 0, 1, 1], [], []>} : vector<8x32xf32>, vector<32x128xf32>, vector<8x128xf32> -> vector<8x128xf32>
    %140 = arith.addf %137, %139 : vector<8x128xf32>
    %141 = vector.extract_strided_slice %140 {offsets = [0, 0], sizes = [8, 96], strides = [1, 1]} : vector<8x128xf32> to vector<8x96xf32>
    %142 = arith.negf %141 : vector<8x96xf32>
    %143 = math.exp %142 : vector<8x96xf32>
    %cst_48 = arith.constant 1.000000e+00 : f32
    %144 = vector.broadcast %cst_48 : f32 to vector<8x96xf32>
    %145 = arith.addf %144, %143 : vector<8x96xf32>
    %146 = arith.divf %144, %145 : vector<8x96xf32>
    %147 = vector.extract_strided_slice %146 {offsets = [0, 0], sizes = [8, 32], strides = [1, 1]} : vector<8x96xf32> to vector<8x32xf32>
    %148 = vector.extract_strided_slice %146 {offsets = [0, 32], sizes = [8, 32], strides = [1, 1]} : vector<8x96xf32> to vector<8x32xf32>
    %149 = vector.extract_strided_slice %146 {offsets = [0, 64], sizes = [8, 32], strides = [1, 1]} : vector<8x96xf32> to vector<8x32xf32>
    %150 = vector.extract_strided_slice %140 {offsets = [0, 96], sizes = [8, 32], strides = [1, 1]} : vector<8x128xf32> to vector<8x32xf32>
    %151 = math.tanh %150 : vector<8x32xf32>
    %152 = arith.mulf %148, %129 : vector<8x32xf32>
    %153 = arith.mulf %147, %151 : vector<8x32xf32>
    %154 = arith.addf %152, %153 : vector<8x32xf32>
    %155 = math.tanh %154 : vector<8x32xf32>
    %156 = arith.mulf %149, %155 : vector<8x32xf32>
    %157 = arith.index_cast %135 : i32 to index
    %c0_49 = arith.constant 0 : index
    %158 = vector.load %arg8[%157, %c0_49] : memref<64x32xf32, #tpu.memory_space<vmem>>, vector<8x32xf32>
    tpu.vector_store %arg8[%157, %c0_49], %156 {strides = array<i32>} : memref<64x32xf32, #tpu.memory_space<vmem>>, vector<8x32xf32>,
    %c6_i32 = arith.constant 6 : i32
    %c8_i32_50 = arith.constant 8 : i32
    %159 = arith.muli %c6_i32, %c8_i32_50 : i32
    %160 = tpu.assume_multiple %159, 8 : i32
    %161 = arith.index_cast %160 : i32 to index
    %c0_51 = arith.constant 0 : index
    %162 = vector.load %arg7[%161, %c0_51] : memref<64x128xf32, #tpu.memory_space<vmem>>, vector<8x128xf32>
    %c0_52 = arith.constant 0 : index
    %c0_53 = arith.constant 0 : index
    %163 = vector.load %arg2[%c0_52, %c0_53] : memref<32x128xf32, #tpu.memory_space<vmem>>, vector<32x128xf32>
    %cst_54 = arith.constant dense<0.000000e+00> : vector<8x128xf32>
    %164 = tpu.matmul %156, %163, %cst_54 {dimension_numbers = #tpu.dot_dimension_numbers<[1], [0], [0], [1], [0, 0, 1, 1], [], []>} : vector<8x32xf32>, vector<32x128xf32>, vector<8x128xf32> -> vector<8x128xf32>
    %165 = arith.addf %162, %164 : vector<8x128xf32>
    %166 = vector.extract_strided_slice %165 {offsets = [0, 0], sizes = [8, 96], strides = [1, 1]} : vector<8x128xf32> to vector<8x96xf32>
    %167 = arith.negf %166 : vector<8x96xf32>
    %168 = math.exp %167 : vector<8x96xf32>
    %cst_55 = arith.constant 1.000000e+00 : f32
    %169 = vector.broadcast %cst_55 : f32 to vector<8x96xf32>
    %170 = arith.addf %169, %168 : vector<8x96xf32>
    %171 = arith.divf %169, %170 : vector<8x96xf32>
    %172 = vector.extract_strided_slice %171 {offsets = [0, 0], sizes = [8, 32], strides = [1, 1]} : vector<8x96xf32> to vector<8x32xf32>
    %173 = vector.extract_strided_slice %171 {offsets = [0, 32], sizes = [8, 32], strides = [1, 1]} : vector<8x96xf32> to vector<8x32xf32>
    %174 = vector.extract_strided_slice %171 {offsets = [0, 64], sizes = [8, 32], strides = [1, 1]} : vector<8x96xf32> to vector<8x32xf32>
    %175 = vector.extract_strided_slice %165 {offsets = [0, 96], sizes = [8, 32], strides = [1, 1]} : vector<8x128xf32> to vector<8x32xf32>
    %176 = math.tanh %175 : vector<8x32xf32>
    %177 = arith.mulf %173, %154 : vector<8x32xf32>
    %178 = arith.mulf %172, %176 : vector<8x32xf32>
    %179 = arith.addf %177, %178 : vector<8x32xf32>
    %180 = math.tanh %179 : vector<8x32xf32>
    %181 = arith.mulf %174, %180 : vector<8x32xf32>
    %182 = arith.index_cast %160 : i32 to index
    %c0_56 = arith.constant 0 : index
    %183 = vector.load %arg8[%182, %c0_56] : memref<64x32xf32, #tpu.memory_space<vmem>>, vector<8x32xf32>
    tpu.vector_store %arg8[%182, %c0_56], %181 {strides = array<i32>} : memref<64x32xf32, #tpu.memory_space<vmem>>, vector<8x32xf32>,
    %c7_i32 = arith.constant 7 : i32
    %c8_i32_57 = arith.constant 8 : i32
    %184 = arith.muli %c7_i32, %c8_i32_57 : i32
    %185 = tpu.assume_multiple %184, 8 : i32
    %186 = arith.index_cast %185 : i32 to index
    %c0_58 = arith.constant 0 : index
    %187 = vector.load %arg7[%186, %c0_58] : memref<64x128xf32, #tpu.memory_space<vmem>>, vector<8x128xf32>
    %c0_59 = arith.constant 0 : index
    %c0_60 = arith.constant 0 : index
    %188 = vector.load %arg2[%c0_59, %c0_60] : memref<32x128xf32, #tpu.memory_space<vmem>>, vector<32x128xf32>
    %cst_61 = arith.constant dense<0.000000e+00> : vector<8x128xf32>
    %189 = tpu.matmul %181, %188, %cst_61 {dimension_numbers = #tpu.dot_dimension_numbers<[1], [0], [0], [1], [0, 0, 1, 1], [], []>} : vector<8x32xf32>, vector<32x128xf32>, vector<8x128xf32> -> vector<8x128xf32>
    %190 = arith.addf %187, %189 : vector<8x128xf32>
    %191 = vector.extract_strided_slice %190 {offsets = [0, 0], sizes = [8, 96], strides = [1, 1]} : vector<8x128xf32> to vector<8x96xf32>
    %192 = arith.negf %191 : vector<8x96xf32>
    %193 = math.exp %192 : vector<8x96xf32>
    %cst_62 = arith.constant 1.000000e+00 : f32
    %194 = vector.broadcast %cst_62 : f32 to vector<8x96xf32>
    %195 = arith.addf %194, %193 : vector<8x96xf32>
    %196 = arith.divf %194, %195 : vector<8x96xf32>
    %197 = vector.extract_strided_slice %196 {offsets = [0, 0], sizes = [8, 32], strides = [1, 1]} : vector<8x96xf32> to vector<8x32xf32>
    %198 = vector.extract_strided_slice %196 {offsets = [0, 32], sizes = [8, 32], strides = [1, 1]} : vector<8x96xf32> to vector<8x32xf32>
    %199 = vector.extract_strided_slice %196 {offsets = [0, 64], sizes = [8, 32], strides = [1, 1]} : vector<8x96xf32> to vector<8x32xf32>
    %200 = vector.extract_strided_slice %190 {offsets = [0, 96], sizes = [8, 32], strides = [1, 1]} : vector<8x128xf32> to vector<8x32xf32>
    %201 = math.tanh %200 : vector<8x32xf32>
    %202 = arith.mulf %198, %179 : vector<8x32xf32>
    %203 = arith.mulf %197, %201 : vector<8x32xf32>
    %204 = arith.addf %202, %203 : vector<8x32xf32>
    %205 = math.tanh %204 : vector<8x32xf32>
    %206 = arith.mulf %199, %205 : vector<8x32xf32>
    %207 = arith.index_cast %185 : i32 to index
    %c0_63 = arith.constant 0 : index
    %208 = vector.load %arg8[%207, %c0_63] : memref<64x32xf32, #tpu.memory_space<vmem>>, vector<8x32xf32>
    tpu.vector_store %arg8[%207, %c0_63], %206 {strides = array<i32>} : memref<64x32xf32, #tpu.memory_space<vmem>>, vector<8x32xf32>,
    %c8_i32_64 = arith.constant 8 : i32
    %c0_65 = arith.constant 0 : index
    %c0_66 = arith.constant 0 : index
    %209 = vector.load %arg8[%c0_65, %c0_66] : memref<64x32xf32, #tpu.memory_space<vmem>>, vector<64x32xf32>
    %c0_67 = arith.constant 0 : index
    %c0_68 = arith.constant 0 : index
    %210 = vector.load %arg4[%c0_67, %c0_68] : memref<1x32xf32, #tpu.memory_space<vmem>>, vector<1x32xf32>
    %211 = vector.broadcast %210 : vector<1x32xf32> to vector<64x32xf32>
    %212 = arith.mulf %209, %211 : vector<64x32xf32>
    %cst_69 = arith.constant dense<0.000000e+00> : vector<64xf32>
    %213 = vector.multi_reduction <add>, %212, %cst_69 [1] : vector<64x32xf32> to vector<64xf32>
    %214 = vector.shape_cast %213 : vector<64xf32> to vector<64x1xf32>
    %c0_70 = arith.constant 0 : index
    %c0_71 = arith.constant 0 : index
    %215 = vector.load %arg5[%c0_70, %c0_71] : memref<1x1xf32, #tpu.memory_space<vmem>>, vector<1x1xf32>
    %216 = vector.broadcast %215 : vector<1x1xf32> to vector<64x1xf32>
    %217 = arith.addf %214, %216 : vector<64x1xf32>
    %218 = tpu.iota {dimensions = array<i32: 1>} : vector<64x128xi32>
    %c0_i32_72 = arith.constant 0 : i32
    %219 = vector.broadcast %c0_i32_72 : i32 to vector<64x128xi32>
    %220 = arith.cmpi eq, %218, %219 : vector<64x128xi32>
    %cst_73 = arith.constant 1.000000e+00 : f32
    %cst_74 = arith.constant -1.000000e+00 : f32
    %221 = vector.broadcast %cst_73 : f32 to vector<64x128xf32>
    %222 = vector.broadcast %cst_74 : f32 to vector<64x128xf32>
    %223 = arith.select %220, %221, %222 : vector<64x128xi1>, vector<64x128xf32>
    %224 = vector.broadcast %217 : vector<64x1xf32> to vector<64x128xf32>
    %225 = arith.mulf %224, %223 : vector<64x128xf32>
    %cst_75 = arith.constant 0.000000e+00 : f32
    %226 = vector.broadcast %cst_75 : f32 to vector<64x128xf32>
    %227 = arith.maximumf %225, %226 : vector<64x128xf32>
    %228 = vector.broadcast %cst_75 : f32 to vector<64x128xf32>
    %229 = arith.subf %225, %228 : vector<64x128xf32>
    %230 = arith.cmpf one, %229, %229 : vector<64x128xf32>
    %231 = vector.broadcast %cst_75 : f32 to vector<64x128xf32>
    %232 = arith.addf %225, %231 : vector<64x128xf32>
    %233 = math.absf %229 : vector<64x128xf32>
    %cst_76 = arith.constant 0.000000e+00 : f32
    %234 = vector.broadcast %cst_76 : f32 to vector<64x128xf32>
    %235 = arith.subf %234, %233 : vector<64x128xf32>
    %236 = math.exp %235 : vector<64x128xf32>
    %237 = math.log1p %236 : vector<64x128xf32>
    %238 = arith.addf %227, %237 : vector<64x128xf32>
    %239 = arith.select %230, %232, %238 : vector<64x128xi1>, vector<64x128xf32>
    %cst_77 = arith.constant 0.000000e+00 : f32
    %240 = vector.broadcast %cst_77 : f32 to vector<64x128xf32>
    %241 = arith.subf %240, %239 : vector<64x128xf32>
    %c0_78 = arith.constant 0 : index
    %c0_79 = arith.constant 0 : index
    %242 = vector.load %arg6[%c0_78, %c0_79] : memref<64x128xf32, #tpu.memory_space<vmem>>, vector<64x128xf32>
    tpu.vector_store %arg6[%c0_78, %c0_79], %241 {strides = array<i32>} : memref<64x128xf32, #tpu.memory_space<vmem>>, vector<64x128xf32>,
    return
  }
}

</mosaic_0001>

<llo_original>
// kernel: lstm_tagger_forward.1
$region0: #{lstm_tagger_forward.1}
  #allocation0 [shape = 'u32[]', space=smem, size = 0x4, offset = 0x4, fixed_abs, tag = 'smem constant byte address 0x4 - core index']
  #allocation1 [shape = 'u32[144,128]{1,0:T(1,128)}', space=vmem, size = 0x12000, scoped, tag = 'internal scratch']
  #allocation2 [shape = 'f32[64,128]{1,0:T(8,128)}', space=vmem, size = 0x8000, scoped, tag = 'scratch operand']
  #allocation3 [shape = 'f32[64,32]{1,0:T(8,128)}', space=vmem, size = 0x8000, scoped, tag = 'scratch operand']
  #allocation4 [shape = 'f32[1,1]{1,0:T(1,128)S(1)}', space=vmem, size = 0x200, scoped, tag = 'scoped memory for lstm_tagger_forward.1']
  %s0 = inlined_call_operand.vmem [shape: f32[64,8], index: 0, kind: input, shape index: {}]
  %s1 = inlined_call_operand.vmem [shape: f32[8,128], index: 1, kind: input, shape index: {}]
  %s2 = inlined_call_operand.vmem [shape: f32[32,128], index: 2, kind: input, shape index: {}]
  %s3 = inlined_call_operand.vmem [shape: f32[1,128], index: 3, kind: input, shape index: {}]
  %s4 = inlined_call_operand.vmem [shape: f32[1,32], index: 4, kind: input, shape index: {}]
  %s5 = inlined_call_operand.<no memory space> [shape: f32[1,1], index: 5, kind: input, shape index: {}]
  %s6 = inlined_call_operand.vmem [shape: f32[64,128], index: 6, kind: output, shape index: {}]
  %s7 = sld [smem:[#allocation0]]
  $region34: #{lstm_tagger_forward.1} parent=0
    _
  %s9 = ssub.s32 1, %s7
  %s10 = scalar_select 0, %s9, %s7
  %v11 = vstv %s5
  %12 = vst [vmem:[#allocation4] sm:$0x1] %v11
  // Predicated region
  $region2: #{lstm_tagger_forward.1} parent=0 // pred_check
    _
  $region3: #{lstm_tagger_forward.1} parent=0 // pred_check_branch
    %14 = sbr.rel (0) target = $region5
  $region4: #{lstm_tagger_forward.1} parent=0 // pred_region
    _
  $region5: #{lstm_tagger_forward.1} parent=0 // pred_fallthru
    _
  // Predicated region
  $region6: #{lstm_tagger_forward.1} parent=0 // pred_check
    _
  $region7: #{lstm_tagger_forward.1} parent=0 // pred_check_branch
    %16 = sbr.rel (0) target = $region9
  $region8: #{lstm_tagger_forward.1} parent=0 // pred_region
    _
  $region9: #{lstm_tagger_forward.1} parent=0 // pred_fallthru
    _
  // Predicated region
  $region10: #{lstm_tagger_forward.1} parent=0 // pred_check
    _
  $region11: #{lstm_tagger_forward.1} parent=0 // pred_check_branch
    %18 = sbr.rel (0) target = $region13
  $region12: #{lstm_tagger_forward.1} parent=0 // pred_region
    _
  $region13: #{lstm_tagger_forward.1} parent=0 // pred_fallthru
    _
  // Predicated region
  $region14: #{lstm_tagger_forward.1} parent=0 // pred_check
    _
  $region15: #{lstm_tagger_forward.1} parent=0 // pred_check_branch
    %20 = sbr.rel (0) target = $region17
  $region16: #{lstm_tagger_forward.1} parent=0 // pred_region
    _
  $region17: #{lstm_tagger_forward.1} parent=0 // pred_fallthru
    _
  // Predicated region
  $region18: #{lstm_tagger_forward.1} parent=0 // pred_check
    _
  $region19: #{lstm_tagger_forward.1} parent=0 // pred_check_branch
    %22 = sbr.rel (0) target = $region21
  $region20: #{lstm_tagger_forward.1} parent=0 // pred_region
    _
  $region21: #{lstm_tagger_forward.1} parent=0 // pred_fallthru
    _
  // Predicated region
  $region22: #{lstm_tagger_forward.1} parent=0 // pred_check
    _
  $region23: #{lstm_tagger_forward.1} parent=0 // pred_check_branch
    %24 = sbr.rel (0) target = $region25
  $region24: #{lstm_tagger_forward.1} parent=0 // pred_region
    _
  $region25: #{lstm_tagger_forward.1} parent=0 // pred_fallthru
    _
  %v25 = vld [vmem:[%s0] sm:$0xff]
  %v26 = vld [vmem:[%s0 + $0x8] sm:$0xff]
  %v27 = vld [vmem:[%s0 + $0x10] sm:$0xff]
  %v28 = vld [vmem:[%s0 + $0x18] sm:$0xff]
  %v29 = vld [vmem:[%s0 + $0x20] sm:$0xff]
  %v30 = vld [vmem:[%s0 + $0x28] sm:$0xff]
  %v31 = vld [vmem:[%s0 + $0x30] sm:$0xff]
  %v32 = vld [vmem:[%s0 + $0x38] sm:$0xff]
  %v33 = vld [vmem:[%s1] sm:$0xff]
  %v34 = vld [vmem:[%s3] sm:$0x1]
  %v36 = vlaneseq
  %v37 = vshrl.u32 %v36, 7
  %v38 = vsub.s32 0, %v37
  %v39 = vrot.slane %v34, %v38
  %vm41 = vcmask 64512
  %v43 = vsel %vm41, %v25, 0
  %v46 = vsel %vm41, %v26, 0
  %v49 = vsel %vm41, %v27, 0
  %v52 = vsel %vm41, %v28, 0
  %v55 = vsel %vm41, %v29, 0
  %v58 = vsel %vm41, %v30, 0
  %v61 = vsel %vm41, %v31, 0
  %v64 = vsel %vm41, %v32, 0
  %66 = vmatprep.subr.mxu0 0.0
  %67 = vmatpush1.msra.mxu0 0.0
  %68 = vmatprep.subr.mxu0 0.0
  %69 = vmatpush1.msra.mxu0 0.0
  %70 = vmatprep.subr.mxu0 0.0
  %71 = vmatpush1.msra.mxu0 0.0
  %72 = vmatprep.subr.mxu0 0.0
  %73 = vmatpush1.msra.mxu0 0.0
  %74 = vmatprep.subr.mxu0 0.0
  %75 = vmatpush1.msra.mxu0 0.0
  %76 = vmatprep.subr.mxu0 0.0
  %77 = vmatpush1.msra.mxu0 0.0
  %78 = vmatprep.subr.mxu0 0.0
  %79 = vmatpush1.msra.mxu0 0.0
  %80 = vmatprep.subr.mxu0 0.0
  %81 = vmatpush1.msra.mxu0 0.0
  %82 = vmatprep.subr.mxu0 0.0
  %83 = vmatpush1.msra.mxu0 0.0
  %84 = vmatprep.subr.mxu0 0.0
  %85 = vmatpush1.msra.mxu0 0.0
  %86 = vmatprep.subr.mxu0 0.0
  %87 = vmatpush1.msra.mxu0 0.0
  %88 = vmatprep.subr.mxu0 0.0
  %89 = vmatpush1.msra.mxu0 0.0
  %90 = vmatprep.subr.mxu0 0.0
  %91 = vmatpush1.msra.mxu0 0.0
  %92 = vmatprep.subr.mxu0 0.0
  %93 = vmatpush1.msra.mxu0 0.0
  %94 = vmatprep.subr.mxu0 0.0
  %95 = vmatpush1.msra.mxu0 0.0
  %96 = vmatprep.subr.mxu0 0.0
  %97 = vmatpush1.msra.mxu0 %v33
  %98 = vmatprep.subr.mxu0 0.0
  %99 = vmatpush2.msra.mxu0 0.0
  %100 = vmatprep.subr.mxu0 0.0
  %101 = vmatpush2.msra.mxu0 0.0
  %102 = vmatprep.subr.mxu0 0.0
  %103 = vmatpush2.msra.mxu0 0.0
  %104 = vmatprep.subr.mxu0 0.0
  %105 = vmatpush2.msra.mxu0 0.0
  %106 = vmatprep.subr.mxu0 0.0
  %107 = vmatpush2.msra.mxu0 0.0
  %108 = vmatprep.subr.mxu0 0.0
  %109 = vmatpush2.msra.mxu0 0.0
  %110 = vmatprep.subr.mxu0 0.0
  %111 = vmatpush2.msra.mxu0 0.0
  %112 = vmatprep.subr.mxu0 0.0
  %113 = vmatpush2.msra.mxu0 0.0
  %114 = vmatprep.subr.mxu0 0.0
  %115 = vmatpush2.msra.mxu0 0.0
  %116 = vmatprep.subr.mxu0 0.0
  %117 = vmatpush2.msra.mxu0 0.0
  %118 = vmatprep.subr.mxu0 0.0
  %119 = vmatpush2.msra.mxu0 0.0
  %120 = vmatprep.subr.mxu0 0.0
  %121 = vmatpush2.msra.mxu0 0.0
  %122 = vmatprep.subr.mxu0 0.0
  %123 = vmatpush2.msra.mxu0 0.0
  %124 = vmatprep.subr.mxu0 0.0
  %125 = vmatpush2.msra.mxu0 0.0
  %126 = vmatprep.subr.mxu0 0.0
  %127 = vmatpush2.msra.mxu0 0.0
  %128 = vmatprep.subr.mxu0 0.0
  %129 = vmatpush2.msra.mxu0 0.0
  %130 = vmatprep.mubr.f32.mxu0 0.0
  %131 = vmatmul.mubr.f32.gmra.mxu0 %v43
  %v132 = vpop.f32.mrf.mxu0
  %v133 = vadd.f32 %v39, %v132
  %v134 = vpop.f32.mrf.mxu0
  %135 = vmatprep.mubr.f32.mxu0 0.0
  %136 = vmatmul.mubr.f32.gmra.mxu0 %v46
  %v137 = vpop.f32.mrf.mxu0
  %v138 = vadd.f32 %v39, %v137
  %v139 = vpop.f32.mrf.mxu0
  %140 = vmatprep.mubr.f32.mxu0 0.0
  %141 = vmatmul.mubr.f32.gmra.mxu0 %v49
  %v142 = vpop.f32.mrf.mxu0
  %v143 = vadd.f32 %v39, %v142
  %v144 = vpop.f32.mrf.mxu0
  %145 = vmatprep.mubr.f32.mxu0 0.0
  %146 = vmatmul.mubr.f32.gmra.mxu0 %v52
  %v147 = vpop.f32.mrf.mxu0
  %v148 = vadd.f32 %v39, %v147
  %v149 = vpop.f32.mrf.mxu0
  %150 = vmatprep.mubr.f32.mxu0 0.0
  %151 = vmatmul.mubr.f32.gmra.mxu0 %v55
  %v152 = vpop.f32.mrf.mxu0
  %v153 = vadd.f32 %v39, %v152
  %v154 = vpop.f32.mrf.mxu0
  %155 = vmatprep.mubr.f32.mxu0 0.0
  %156 = vmatmul.mubr.f32.gmra.mxu0 %v58
  %v157 = vpop.f32.mrf.mxu0
  %v158 = vadd.f32 %v39, %v157
  %v159 = vpop.f32.mrf.mxu0
  %160 = vmatprep.mubr.f32.mxu0 0.0
  %161 = vmatmul.mubr.f32.gmra.mxu0 %v61
  %v162 = vpop.f32.mrf.mxu0
  %v163 = vadd.f32 %v39, %v162
  %v164 = vpop.f32.mrf.mxu0
  %165 = vmatprep.mubr.f32.mxu0 0.0
  %166 = vmatmul.mubr.f32.gmra.mxu0 %v64
  %v167 = vpop.f32.mrf.mxu0
  %v168 = vadd.f32 %v39, %v167
  %v169 = vpop.f32.mrf.mxu0
  %170 = vdwg.mxu0
  %171 = vst [vmem:[#allocation2] sm:$0xff] %v133
  %172 = vst [vmem:[#allocation2 + $0x8] sm:$0xff] %v138
  %173 = vst [vmem:[#allocation2 + $0x10] sm:$0xff] %v143
  %174 = vst [vmem:[#allocation2 + $0x18] sm:$0xff] %v148
  %175 = vst [vmem:[#allocation2 + $0x20] sm:$0xff] %v153
  %176 = vst [vmem:[#allocation2 + $0x28] sm:$0xff] %v158
  %177 = vst [vmem:[#allocation2 + $0x30] sm:$0xff] %v163
  %178 = vst [vmem:[#allocation2 + $0x38] sm:$0xff] %v168
  %v179 = vld [vmem:[#allocation2] sm:$0xff]
  %v180 = vld [vmem:[%s2] sm:$0xff]
  %v181 = vld [vmem:[%s2 + $0x8] sm:$0xff]
  %v182 = vld [vmem:[%s2 + $0x10] sm:$0xff]
  %v183 = vld [vmem:[%s2 + $0x18] sm:$0xff]
  %vm184 = vcmask 261120
  %v186 = vsel %vm184, 0.0, 0
  %188 = vmatprep.subr.mxu0 0.0
  %189 = vmatpush1.msra.mxu0 0.0
  %190 = vmatprep.subr.mxu0 0.0
  %191 = vmatpush1.msra.mxu0 0.0
  %192 = vmatprep.subr.mxu0 0.0
  %193 = vmatpush1.msra.mxu0 0.0
  %194 = vmatprep.subr.mxu0 0.0
  %195 = vmatpush1.msra.mxu0 0.0
  %196 = vmatprep.subr.mxu0 0.0
  %197 = vmatpush1.msra.mxu0 0.0
  %198 = vmatprep.subr.mxu0 0.0
  %199 = vmatpush1.msra.mxu0 0.0
  %200 = vmatprep.subr.mxu0 0.0
  %201 = vmatpush1.msra.mxu0 0.0
  %202 = vmatprep.subr.mxu0 0.0
  %203 = vmatpush1.msra.mxu0 0.0
  %204 = vmatprep.subr.mxu0 0.0
  %205 = vmatpush1.msra.mxu0 0.0
  %206 = vmatprep.subr.mxu0 0.0
  %207 = vmatpush1.msra.mxu0 0.0
  %208 = vmatprep.subr.mxu0 0.0
  %209 = vmatpush1.msra.mxu0 0.0
  %210 = vmatprep.subr.mxu0 0.0
  %211 = vmatpush1.msra.mxu0 0.0
  %212 = vmatprep.subr.mxu0 0.0
  %213 = vmatpush1.msra.mxu0 %v183
  %214 = vmatprep.subr.mxu0 0.0
  %215 = vmatpush1.msra.mxu0 %v182
  %216 = vmatprep.subr.mxu0 0.0
  %217 = vmatpush1.msra.mxu0 %v181
  %218 = vmatprep.subr.mxu0 0.0
  %219 = vmatpush1.msra.mxu0 %v180
  %220 = vmatprep.subr.mxu0 0.0
  %221 = vmatpush2.msra.mxu0 0.0
  %222 = vmatprep.subr.mxu0 0.0
  %223 = vmatpush2.msra.mxu0 0.0
  %224 = vmatprep.subr.mxu0 0.0
  %225 = vmatpush2.msra.mxu0 0.0
  %226 = vmatprep.subr.mxu0 0.0
  %227 = vmatpush2.msra.mxu0 0.0
  %228 = vmatprep.subr.mxu0 0.0
  %229 = vmatpush2.msra.mxu0 0.0
  %230 = vmatprep.subr.mxu0 0.0
  %231 = vmatpush2.msra.mxu0 0.0
  %232 = vmatprep.subr.mxu0 0.0
  %233 = vmatpush2.msra.mxu0 0.0
  %234 = vmatprep.subr.mxu0 0.0
  %235 = vmatpush2.msra.mxu0 0.0
  %236 = vmatprep.subr.mxu0 0.0
  %237 = vmatpush2.msra.mxu0 0.0
  %238 = vmatprep.subr.mxu0 0.0
  %239 = vmatpush2.msra.mxu0 0.0
  %240 = vmatprep.subr.mxu0 0.0
  %241 = vmatpush2.msra.mxu0 0.0
  %242 = vmatprep.subr.mxu0 0.0
  %243 = vmatpush2.msra.mxu0 0.0
  %244 = vmatprep.subr.mxu0 0.0
  %245 = vmatpush2.msra.mxu0 0.0
  %246 = vmatprep.subr.mxu0 0.0
  %247 = vmatpush2.msra.mxu0 0.0
  %248 = vmatprep.subr.mxu0 0.0
  %249 = vmatpush2.msra.mxu0 0.0
  %250 = vmatprep.subr.mxu0 0.0
  %251 = vmatpush2.msra.mxu0 0.0
  %252 = vmatprep.mubr.f32.mxu0 0.0
  %253 = vmatmul.mubr.f32.gmra.mxu0 %v186
  %v254 = vpop.f32.mrf.mxu0
  %v255 = vadd.f32 0.0, %v254
  %v256 = vpop.f32.mrf.mxu0
  %257 = vdwg.mxu0
  %v258 = vadd.f32 %v179, %v255
  %v259 = vxor.u32 %v258, 2147483648
  %v260 = vmul.f32 %v259, 1.442695
  %v261 = vpow.pop %v260
  %v262 = vadd.f32 %v261, 1.0
  %v263 = vrcp.pop %v262
  %v264 = vmul.f32 1.0, %v263
  %v265 = vtanh.pop %v258
  %v266 = vmul.f32 %v264, 0.0
  %268 = vrot.lane.b32.xlu0 %v265, 32
  %v269 = vpop.permute.xlu0 %268
  %v271 = vmul.f32 %v264, %v269
  %273 = vrot.lane.b32.xlu0 %v271, 32
  %v274 = vpop.permute.xlu0 %273
  %v276 = vadd.f32 %v266, %v274
  %v277 = vtanh.pop %v276
  %279 = vrot.lane.b32.xlu0 %v277, 32
  %v280 = vpop.permute.xlu0 %279
  %v282 = vmul.f32 %v264, %v280
  %284 = vrot.lane.b32.xlu0 %v282, 64
  %v285 = vpop.permute.xlu0 %284
  %287 = vst.msk [vmem:[#allocation3] sm:$0xff] %vm184, %v285
  %s288 = scalar_lea.vmem [#allocation2], 8
  %v289 = vld [vmem:[%s288] sm:$0xff]
  %v290 = vld [vmem:[%s2] sm:$0xff]
  %v291 = vld [vmem:[%s2 + $0x8] sm:$0xff]
  %v292 = vld [vmem:[%s2 + $0x10] sm:$0xff]
  %v293 = vld [vmem:[%s2 + $0x18] sm:$0xff]
  %v294 = vsel %vm184, %v285, 0
  %296 = vmatprep.subr.mxu0 0.0
  %297 = vmatpush1.msra.mxu0 0.0
  %298 = vmatprep.subr.mxu0 0.0
  %299 = vmatpush1.msra.mxu0 0.0
  %300 = vmatprep.subr.mxu0 0.0
  %301 = vmatpush1.msra.mxu0 0.0
  %302 = vmatprep.subr.mxu0 0.0
  %303 = vmatpush1.msra.mxu0 0.0
  %304 = vmatprep.subr.mxu0 0.0
  %305 = vmatpush1.msra.mxu0 0.0
  %306 = vmatprep.subr.mxu0 0.0
  %307 = vmatpush1.msra.mxu0 0.0
  %308 = vmatprep.subr.mxu0 0.0
  %309 = vmatpush1.msra.mxu0 0.0
  %310 = vmatprep.subr.mxu0 0.0
  %311 = vmatpush1.msra.mxu0 0.0
  %312 = vmatprep.subr.mxu0 0.0
  %313 = vmatpush1.msra.mxu0 0.0
  %314 = vmatprep.subr.mxu0 0.0
  %315 = vmatpush1.msra.mxu0 0.0
  %316 = vmatprep.subr.mxu0 0.0
  %317 = vmatpush1.msra.mxu0 0.0
  %318 = vmatprep.subr.mxu0 0.0
  %319 = vmatpush1.msra.mxu0 0.0
  %320 = vmatprep.subr.mxu0 0.0
  %321 = vmatpush1.msra.mxu0 %v293
  %322 = vmatprep.subr.mxu0 0.0
  %323 = vmatpush1.msra.mxu0 %v292
  %324 = vmatprep.subr.mxu0 0.0
  %325 = vmatpush1.msra.mxu0 %v291
  %326 = vmatprep.subr.mxu0 0.0
  %327 = vmatpush1.msra.mxu0 %v290
  %328 = vmatprep.subr.mxu0 0.0
  %329 = vmatpush2.msra.mxu0 0.0
  %330 = vmatprep.subr.mxu0 0.0
  %331 = vmatpush2.msra.mxu0 0.0
  %332 = vmatprep.subr.mxu0 0.0
  %333 = vmatpush2.msra.mxu0 0.0
  %334 = vmatprep.subr.mxu0 0.0
  %335 = vmatpush2.msra.mxu0 0.0
  %336 = vmatprep.subr.mxu0 0.0
  %337 = vmatpush2.msra.mxu0 0.0
  %338 = vmatprep.subr.mxu0 0.0
  %339 = vmatpush2.msra.mxu0 0.0
  %340 = vmatprep.subr.mxu0 0.0
  %341 = vmatpush2.msra.mxu0 0.0
  %342 = vmatprep.subr.mxu0 0.0
  %343 = vmatpush2.msra.mxu0 0.0
  %344 = vmatprep.subr.mxu0 0.0
  %345 = vmatpush2.msra.mxu0 0.0
  %346 = vmatprep.subr.mxu0 0.0
  %347 = vmatpush2.msra.mxu0 0.0
  %348 = vmatprep.subr.mxu0 0.0
  %349 = vmatpush2.msra.mxu0 0.0
  %350 = vmatprep.subr.mxu0 0.0
  %351 = vmatpush2.msra.mxu0 0.0
  %352 = vmatprep.subr.mxu0 0.0
  %353 = vmatpush2.msra.mxu0 0.0
  %354 = vmatprep.subr.mxu0 0.0
  %355 = vmatpush2.msra.mxu0 0.0
  %356 = vmatprep.subr.mxu0 0.0
  %357 = vmatpush2.msra.mxu0 0.0
  %358 = vmatprep.subr.mxu0 0.0
  %359 = vmatpush2.msra.mxu0 0.0
  %360 = vmatprep.mubr.f32.mxu0 0.0
  %361 = vmatmul.mubr.f32.gmra.mxu0 %v294
  %v362 = vpop.f32.mrf.mxu0
  %v363 = vadd.f32 0.0, %v362
  %v364 = vpop.f32.mrf.mxu0
  %365 = vdwg.mxu0
  %v366 = vadd.f32 %v289, %v363
  %v367 = vxor.u32 %v366, 2147483648
  %v368 = vmul.f32 %v367, 1.442695
  %v369 = vpow.pop %v368
  %v370 = vadd.f32 %v369, 1.0
  %v371 = vrcp.pop %v370
  %v372 = vmul.f32 1.0, %v371
  %v373 = vtanh.pop %v366
  %v374 = vmul.f32 %v372, %v276
  %376 = vrot.lane.b32.xlu0 %v373, 32
  %v377 = vpop.permute.xlu0 %376
  %v379 = vmul.f32 %v372, %v377
  %381 = vrot.lane.b32.xlu0 %v379, 32
  %v382 = vpop.permute.xlu0 %381
  %v384 = vadd.f32 %v374, %v382
  %v385 = vtanh.pop %v384
  %387 = vrot.lane.b32.xlu0 %v385, 32
  %v388 = vpop.permute.xlu0 %387
  %v390 = vmul.f32 %v372, %v388
  %392 = vrot.lane.b32.xlu0 %v390, 64
  %v393 = vpop.permute.xlu0 %392
  %s395 = scalar_lea.vmem [#allocation3], 8
  %396 = vst.msk [vmem:[%s395] sm:$0xff] %vm184, %v393
  %s397 = scalar_lea.vmem [#allocation2], 16
  %v398 = vld [vmem:[%s397] sm:$0xff]
  %v399 = vld [vmem:[%s2] sm:$0xff]
  %v400 = vld [vmem:[%s2 + $0x8] sm:$0xff]
  %v401 = vld [vmem:[%s2 + $0x10] sm:$0xff]
  %v402 = vld [vmem:[%s2 + $0x18] sm:$0xff]
  %v403 = vsel %vm184, %v393, 0
  %405 = vmatprep.subr.mxu0 0.0
  %406 = vmatpush1.msra.mxu0 0.0
  %407 = vmatprep.subr.mxu0 0.0
  %408 = vmatpush1.msra.mxu0 0.0
  %409 = vmatprep.subr.mxu0 0.0
  %410 = vmatpush1.msra.mxu0 0.0
  %411 = vmatprep.subr.mxu0 0.0
  %412 = vmatpush1.msra.mxu0 0.0
  %413 = vmatprep.subr.mxu0 0.0
  %414 = vmatpush1.msra.mxu0 0.0
  %415 = vmatprep.subr.mxu0 0.0
  %416 = vmatpush1.msra.mxu0 0.0
  %417 = vmatprep.subr.mxu0 0.0
  %418 = vmatpush1.msra.mxu0 0.0
  %419 = vmatprep.subr.mxu0 0.0
  %420 = vmatpush1.msra.mxu0 0.0
  %421 = vmatprep.subr.mxu0 0.0
  %422 = vmatpush1.msra.mxu0 0.0
  %423 = vmatprep.subr.mxu0 0.0
  %424 = vmatpush1.msra.mxu0 0.0
  %425 = vmatprep.subr.mxu0 0.0
  %426 = vmatpush1.msra.mxu0 0.0
  %427 = vmatprep.subr.mxu0 0.0
  %428 = vmatpush1.msra.mxu0 0.0
  %429 = vmatprep.subr.mxu0 0.0
  %430 = vmatpush1.msra.mxu0 %v402
  %431 = vmatprep.subr.mxu0 0.0
  %432 = vmatpush1.msra.mxu0 %v401
  %433 = vmatprep.subr.mxu0 0.0
  %434 = vmatpush1.msra.mxu0 %v400
  %435 = vmatprep.subr.mxu0 0.0
  %436 = vmatpush1.msra.mxu0 %v399
  %437 = vmatprep.subr.mxu0 0.0
  %438 = vmatpush2.msra.mxu0 0.0
  %439 = vmatprep.subr.mxu0 0.0
  %440 = vmatpush2.msra.mxu0 0.0
  %441 = vmatprep.subr.mxu0 0.0
  %442 = vmatpush2.msra.mxu0 0.0
  %443 = vmatprep.subr.mxu0 0.0
  %444 = vmatpush2.msra.mxu0 0.0
  %445 = vmatprep.subr.mxu0 0.0
  %446 = vmatpush2.msra.mxu0 0.0
  %447 = vmatprep.subr.mxu0 0.0
  %448 = vmatpush2.msra.mxu0 0.0
  %449 = vmatprep.subr.mxu0 0.0
  %450 = vmatpush2.msra.mxu0 0.0
  %451 = vmatprep.subr.mxu0 0.0
  %452 = vmatpush2.msra.mxu0 0.0
  %453 = vmatprep.subr.mxu0 0.0
  %454 = vmatpush2.msra.mxu0 0.0
  %455 = vmatprep.subr.mxu0 0.0
  %456 = vmatpush2.msra.mxu0 0.0
  %457 = vmatprep.subr.mxu0 0.0
  %458 = vmatpush2.msra.mxu0 0.0
  %459 = vmatprep.subr.mxu0 0.0
  %460 = vmatpush2.msra.mxu0 0.0
  %461 = vmatprep.subr.mxu0 0.0
  %462 = vmatpush2.msra.mxu0 0.0
  %463 = vmatprep.subr.mxu0 0.0
  %464 = vmatpush2.msra.mxu0 0.0
  %465 = vmatprep.subr.mxu0 0.0
  %466 = vmatpush2.msra.mxu0 0.0
  %467 = vmatprep.subr.mxu0 0.0
  %468 = vmatpush2.msra.mxu0 0.0
  %469 = vmatprep.mubr.f32.mxu0 0.0
  %470 = vmatmul.mubr.f32.gmra.mxu0 %v403
  %v471 = vpop.f32.mrf.mxu0
  %v472 = vadd.f32 0.0, %v471
  %v473 = vpop.f32.mrf.mxu0
  %474 = vdwg.mxu0
  %v475 = vadd.f32 %v398, %v472
  %v476 = vxor.u32 %v475, 2147483648
  %v477 = vmul.f32 %v476, 1.442695
  %v478 = vpow.pop %v477
  %v479 = vadd.f32 %v478, 1.0
  %v480 = vrcp.pop %v479
  %v481 = vmul.f32 1.0, %v480
  %v482 = vtanh.pop %v475
  %v483 = vmul.f32 %v481, %v384
  %485 = vrot.lane.b32.xlu0 %v482, 32
  %v486 = vpop.permute.xlu0 %485
  %v488 = vmul.f32 %v481, %v486
  %490 = vrot.lane.b32.xlu0 %v488, 32
  %v491 = vpop.permute.xlu0 %490
  %v493 = vadd.f32 %v483, %v491
  %v494 = vtanh.pop %v493
  %496 = vrot.lane.b32.xlu0 %v494, 32
  %v497 = vpop.permute.xlu0 %496
  %v499 = vmul.f32 %v481, %v497
  %501 = vrot.lane.b32.xlu0 %v499, 64
  %v502 = vpop.permute.xlu0 %501
  %s504 = scalar_lea.vmem [#allocation3], 16
  %505 = vst.msk [vmem:[%s504] sm:$0xff] %vm184, %v502
  %s506 = scalar_lea.vmem [#allocation2], 24
  %v507 = vld [vmem:[%s506] sm:$0xff]
  %v508 = vld [vmem:[%s2] sm:$0xff]
  %v509 = vld [vmem:[%s2 + $0x8] sm:$0xff]
  %v510 = vld [vmem:[%s2 + $0x10] sm:$0xff]
  %v511 = vld [vmem:[%s2 + $0x18] sm:$0xff]
  %v512 = vsel %vm184, %v502, 0
  %514 = vmatprep.subr.mxu0 0.0
  %515 = vmatpush1.msra.mxu0 0.0
  %516 = vmatprep.subr.mxu0 0.0
  %517 = vmatpush1.msra.mxu0 0.0
  %518 = vmatprep.subr.mxu0 0.0
  %519 = vmatpush1.msra.mxu0 0.0
  %520 = vmatprep.subr.mxu0 0.0
  %521 = vmatpush1.msra.mxu0 0.0
  %522 = vmatprep.subr.mxu0 0.0
  %523 = vmatpush1.msra.mxu0 0.0
  %524 = vmatprep.subr.mxu0 0.0
  %525 = vmatpush1.msra.mxu0 0.0
  %526 = vmatprep.subr.mxu0 0.0
  %527 = vmatpush1.msra.mxu0 0.0
  %528 = vmatprep.subr.mxu0 0.0
  %529 = vmatpush1.msra.mxu0 0.0
  %530 = vmatprep.subr.mxu0 0.0
  %531 = vmatpush1.msra.mxu0 0.0
  %532 = vmatprep.subr.mxu0 0.0
  %533 = vmatpush1.msra.mxu0 0.0
  %534 = vmatprep.subr.mxu0 0.0
  %535 = vmatpush1.msra.mxu0 0.0
  %536 = vmatprep.subr.mxu0 0.0
  %537 = vmatpush1.msra.mxu0 0.0
  %538 = vmatprep.subr.mxu0 0.0
  %539 = vmatpush1.msra.mxu0 %v511
  %540 = vmatprep.subr.mxu0 0.0
  %541 = vmatpush1.msra.mxu0 %v510
  %542 = vmatprep.subr.mxu0 0.0
  %543 = vmatpush1.msra.mxu0 %v509
  %544 = vmatprep.subr.mxu0 0.0
  %545 = vmatpush1.msra.mxu0 %v508
  %546 = vmatprep.subr.mxu0 0.0
  %547 = vmatpush2.msra.mxu0 0.0
  %548 = vmatprep.subr.mxu0 0.0
  %549 = vmatpush2.msra.mxu0 0.0
  %550 = vmatprep.subr.mxu0 0.0
  %551 = vmatpush2.msra.mxu0 0.0
  %552 = vmatprep.subr.mxu0 0.0
  %553 = vmatpush2.msra.mxu0 0.0
  %554 = vmatprep.subr.mxu0 0.0
  %555 = vmatpush2.msra.mxu0 0.0
  %556 = vmatprep.subr.mxu0 0.0
  %557 = vmatpush2.msra.mxu0 0.0
  %558 = vmatprep.subr.mxu0 0.0
  %559 = vmatpush2.msra.mxu0 0.0
  %560 = vmatprep.subr.mxu0 0.0
  %561 = vmatpush2.msra.mxu0 0.0
  %562 = vmatprep.subr.mxu0 0.0
  %563 = vmatpush2.msra.mxu0 0.0
  %564 = vmatprep.subr.mxu0 0.0
  %565 = vmatpush2.msra.mxu0 0.0
  %566 = vmatprep.subr.mxu0 0.0
  %567 = vmatpush2.msra.mxu0 0.0
  %568 = vmatprep.subr.mxu0 0.0
  %569 = vmatpush2.msra.mxu0 0.0
  %570 = vmatprep.subr.mxu0 0.0
  %571 = vmatpush2.msra.mxu0 0.0
  %572 = vmatprep.subr.mxu0 0.0
  %573 = vmatpush2.msra.mxu0 0.0
  %574 = vmatprep.subr.mxu0 0.0
  %575 = vmatpush2.msra.mxu0 0.0
  %576 = vmatprep.subr.mxu0 0.0
  %577 = vmatpush2.msra.mxu0 0.0
  %578 = vmatprep.mubr.f32.mxu0 0.0
  %579 = vmatmul.mubr.f32.gmra.mxu0 %v512
  %v580 = vpop.f32.mrf.mxu0
  %v581 = vadd.f32 0.0, %v580
  %v582 = vpop.f32.mrf.mxu0
  %583 = vdwg.mxu0
  %v584 = vadd.f32 %v507, %v581
  %v585 = vxor.u32 %v584, 2147483648
  %v586 = vmul.f32 %v585, 1.442695
  %v587 = vpow.pop %v586
  %v588 = vadd.f32 %v587, 1.0
  %v589 = vrcp.pop %v588
  %v590 = vmul.f32 1.0, %v589
  %v591 = vtanh.pop %v584
  %v592 = vmul.f32 %v590, %v493
  %594 = vrot.lane.b32.xlu0 %v591, 32
  %v595 = vpop.permute.xlu0 %594
  %v597 = vmul.f32 %v590, %v595
  %599 = vrot.lane.b32.xlu0 %v597, 32
  %v600 = vpop.permute.xlu0 %599
  %v602 = vadd.f32 %v592, %v600
  %v603 = vtanh.pop %v602
  %605 = vrot.lane.b32.xlu0 %v603, 32
  %v606 = vpop.permute.xlu0 %605
  %v608 = vmul.f32 %v590, %v606
  %610 = vrot.lane.b32.xlu0 %v608, 64
  %v611 = vpop.permute.xlu0 %610
  %s613 = scalar_lea.vmem [#allocation3], 24
  %614 = vst.msk [vmem:[%s613] sm:$0xff] %vm184, %v611
  %s615 = scalar_lea.vmem [#allocation2], 32
  %v616 = vld [vmem:[%s615] sm:$0xff]
  %v617 = vld [vmem:[%s2] sm:$0xff]
  %v618 = vld [vmem:[%s2 + $0x8] sm:$0xff]
  %v619 = vld [vmem:[%s2 + $0x10] sm:$0xff]
  %v620 = vld [vmem:[%s2 + $0x18] sm:$0xff]
  %v621 = vsel %vm184, %v611, 0
  %623 = vmatprep.subr.mxu0 0.0
  %624 = vmatpush1.msra.mxu0 0.0
  %625 = vmatprep.subr.mxu0 0.0
  %626 = vmatpush1.msra.mxu0 0.0
  %627 = vmatprep.subr.mxu0 0.0
  %628 = vmatpush1.msra.mxu0 0.0
  %629 = vmatprep.subr.mxu0 0.0
  %630 = vmatpush1.msra.mxu0 0.0
  %631 = vmatprep.subr.mxu0 0.0
  %632 = vmatpush1.msra.mxu0 0.0
  %633 = vmatprep.subr.mxu0 0.0
  %634 = vmatpush1.msra.mxu0 0.0
  %635 = vmatprep.subr.mxu0 0.0
  %636 = vmatpush1.msra.mxu0 0.0
  %637 = vmatprep.subr.mxu0 0.0
  %638 = vmatpush1.msra.mxu0 0.0
  %639 = vmatprep.subr.mxu0 0.0
  %640 = vmatpush1.msra.mxu0 0.0
  %641 = vmatprep.subr.mxu0 0.0
  %642 = vmatpush1.msra.mxu0 0.0
  %643 = vmatprep.subr.mxu0 0.0
  %644 = vmatpush1.msra.mxu0 0.0
  %645 = vmatprep.subr.mxu0 0.0
  %646 = vmatpush1.msra.mxu0 0.0
  %647 = vmatprep.subr.mxu0 0.0
  %648 = vmatpush1.msra.mxu0 %v620
  %649 = vmatprep.subr.mxu0 0.0
  %650 = vmatpush1.msra.mxu0 %v619
  %651 = vmatprep.subr.mxu0 0.0
  %652 = vmatpush1.msra.mxu0 %v618
  %653 = vmatprep.subr.mxu0 0.0
  %654 = vmatpush1.msra.mxu0 %v617
  %655 = vmatprep.subr.mxu0 0.0
  %656 = vmatpush2.msra.mxu0 0.0
  %657 = vmatprep.subr.mxu0 0.0
  %658 = vmatpush2.msra.mxu0 0.0
  %659 = vmatprep.subr.mxu0 0.0
  %660 = vmatpush2.msra.mxu0 0.0
  %661 = vmatprep.subr.mxu0 0.0
  %662 = vmatpush2.msra.mxu0 0.0
  %663 = vmatprep.subr.mxu0 0.0
  %664 = vmatpush2.msra.mxu0 0.0
  %665 = vmatprep.subr.mxu0 0.0
  %666 = vmatpush2.msra.mxu0 0.0
  %667 = vmatprep.subr.mxu0 0.0
  %668 = vmatpush2.msra.mxu0 0.0
  %669 = vmatprep.subr.mxu0 0.0
  %670 = vmatpush2.msra.mxu0 0.0
  %671 = vmatprep.subr.mxu0 0.0
  %672 = vmatpush2.msra.mxu0 0.0
  %673 = vmatprep.subr.mxu0 0.0
  %674 = vmatpush2.msra.mxu0 0.0
  %675 = vmatprep.subr.mxu0 0.0
  %676 = vmatpush2.msra.mxu0 0.0
  %677 = vmatprep.subr.mxu0 0.0
  %678 = vmatpush2.msra.mxu0 0.0
  %679 = vmatprep.subr.mxu0 0.0
  %680 = vmatpush2.msra.mxu0 0.0
  %681 = vmatprep.subr.mxu0 0.0
  %682 = vmatpush2.msra.mxu0 0.0
  %683 = vmatprep.subr.mxu0 0.0
  %684 = vmatpush2.msra.mxu0 0.0
  %685 = vmatprep.subr.mxu0 0.0
  %686 = vmatpush2.msra.mxu0 0.0
  %687 = vmatprep.mubr.f32.mxu0 0.0
  %688 = vmatmul.mubr.f32.gmra.mxu0 %v621
  %v689 = vpop.f32.mrf.mxu0
  %v690 = vadd.f32 0.0, %v689
  %v691 = vpop.f32.mrf.mxu0
  %692 = vdwg.mxu0
  %v693 = vadd.f32 %v616, %v690
  %v694 = vxor.u32 %v693, 2147483648
  %v695 = vmul.f32 %v694, 1.442695
  %v696 = vpow.pop %v695
  %v697 = vadd.f32 %v696, 1.0
  %v698 = vrcp.pop %v697
  %v699 = vmul.f32 1.0, %v698
  %v700 = vtanh.pop %v693
  %v701 = vmul.f32 %v699, %v602
  %703 = vrot.lane.b32.xlu0 %v700, 32
  %v704 = vpop.permute.xlu0 %703
  %v706 = vmul.f32 %v699, %v704
  %708 = vrot.lane.b32.xlu0 %v706, 32
  %v709 = vpop.permute.xlu0 %708
  %v711 = vadd.f32 %v701, %v709
  %v712 = vtanh.pop %v711
  %714 = vrot.lane.b32.xlu0 %v712, 32
  %v715 = vpop.permute.xlu0 %714
  %v717 = vmul.f32 %v699, %v715
  %719 = vrot.lane.b32.xlu0 %v717, 64
  %v720 = vpop.permute.xlu0 %719
  %s722 = scalar_lea.vmem [#allocation3], 32
  %723 = vst.msk [vmem:[%s722] sm:$0xff] %vm184, %v720
  %s724 = scalar_lea.vmem [#allocation2], 40
  %v725 = vld [vmem:[%s724] sm:$0xff]
  %v726 = vld [vmem:[%s2] sm:$0xff]
  %v727 = vld [vmem:[%s2 + $0x8] sm:$0xff]
  %v728 = vld [vmem:[%s2 + $0x10] sm:$0xff]
  %v729 = vld [vmem:[%s2 + $0x18] sm:$0xff]
  %v730 = vsel %vm184, %v720, 0
  %732 = vmatprep.subr.mxu0 0.0
  %733 = vmatpush1.msra.mxu0 0.0
  %734 = vmatprep.subr.mxu0 0.0
  %735 = vmatpush1.msra.mxu0 0.0
  %736 = vmatprep.subr.mxu0 0.0
  %737 = vmatpush1.msra.mxu0 0.0
  %738 = vmatprep.subr.mxu0 0.0
  %739 = vmatpush1.msra.mxu0 0.0
  %740 = vmatprep.subr.mxu0 0.0
  %741 = vmatpush1.msra.mxu0 0.0
  %742 = vmatprep.subr.mxu0 0.0
  %743 = vmatpush1.msra.mxu0 0.0
  %744 = vmatprep.subr.mxu0 0.0
  %745 = vmatpush1.msra.mxu0 0.0
  %746 = vmatprep.subr.mxu0 0.0
  %747 = vmatpush1.msra.mxu0 0.0
  %748 = vmatprep.subr.mxu0 0.0
  %749 = vmatpush1.msra.mxu0 0.0
  %750 = vmatprep.subr.mxu0 0.0
  %751 = vmatpush1.msra.mxu0 0.0
  %752 = vmatprep.subr.mxu0 0.0
  %753 = vmatpush1.msra.mxu0 0.0
  %754 = vmatprep.subr.mxu0 0.0
  %755 = vmatpush1.msra.mxu0 0.0
  %756 = vmatprep.subr.mxu0 0.0
  %757 = vmatpush1.msra.mxu0 %v729
  %758 = vmatprep.subr.mxu0 0.0
  %759 = vmatpush1.msra.mxu0 %v728
  %760 = vmatprep.subr.mxu0 0.0
  %761 = vmatpush1.msra.mxu0 %v727
  %762 = vmatprep.subr.mxu0 0.0
  %763 = vmatpush1.msra.mxu0 %v726
  %764 = vmatprep.subr.mxu0 0.0
  %765 = vmatpush2.msra.mxu0 0.0
  %766 = vmatprep.subr.mxu0 0.0
  %767 = vmatpush2.msra.mxu0 0.0
  %768 = vmatprep.subr.mxu0 0.0
  %769 = vmatpush2.msra.mxu0 0.0
  %770 = vmatprep.subr.mxu0 0.0
  %771 = vmatpush2.msra.mxu0 0.0
  %772 = vmatprep.subr.mxu0 0.0
  %773 = vmatpush2.msra.mxu0 0.0
  %774 = vmatprep.subr.mxu0 0.0
  %775 = vmatpush2.msra.mxu0 0.0
  %776 = vmatprep.subr.mxu0 0.0
  %777 = vmatpush2.msra.mxu0 0.0
  %778 = vmatprep.subr.mxu0 0.0
  %779 = vmatpush2.msra.mxu0 0.0
  %780 = vmatprep.subr.mxu0 0.0
  %781 = vmatpush2.msra.mxu0 0.0
  %782 = vmatprep.subr.mxu0 0.0
  %783 = vmatpush2.msra.mxu0 0.0
  %784 = vmatprep.subr.mxu0 0.0
  %785 = vmatpush2.msra.mxu0 0.0
  %786 = vmatprep.subr.mxu0 0.0
  %787 = vmatpush2.msra.mxu0 0.0
  %788 = vmatprep.subr.mxu0 0.0
  %789 = vmatpush2.msra.mxu0 0.0
  %790 = vmatprep.subr.mxu0 0.0
  %791 = vmatpush2.msra.mxu0 0.0
  %792 = vmatprep.subr.mxu0 0.0
  %793 = vmatpush2.msra.mxu0 0.0
  %794 = vmatprep.subr.mxu0 0.0
  %795 = vmatpush2.msra.mxu0 0.0
  %796 = vmatprep.mubr.f32.mxu0 0.0
  %797 = vmatmul.mubr.f32.gmra.mxu0 %v730
  %v798 = vpop.f32.mrf.mxu0
  %v799 = vadd.f32 0.0, %v798
  %v800 = vpop.f32.mrf.mxu0
  %801 = vdwg.mxu0
  %v802 = vadd.f32 %v725, %v799
  %v803 = vxor.u32 %v802, 2147483648
  %v804 = vmul.f32 %v803, 1.442695
  %v805 = vpow.pop %v804
  %v806 = vadd.f32 %v805, 1.0
  %v807 = vrcp.pop %v806
  %v808 = vmul.f32 1.0, %v807
  %v809 = vtanh.pop %v802
  %v810 = vmul.f32 %v808, %v711
  %812 = vrot.lane.b32.xlu0 %v809, 32
  %v813 = vpop.permute.xlu0 %812
  %v815 = vmul.f32 %v808, %v813
  %817 = vrot.lane.b32.xlu0 %v815, 32
  %v818 = vpop.permute.xlu0 %817
  %v820 = vadd.f32 %v810, %v818
  %v821 = vtanh.pop %v820
  %823 = vrot.lane.b32.xlu0 %v821, 32
  %v824 = vpop.permute.xlu0 %823
  %v826 = vmul.f32 %v808, %v824
  %828 = vrot.lane.b32.xlu0 %v826, 64
  %v829 = vpop.permute.xlu0 %828
  %s831 = scalar_lea.vmem [#allocation3], 40
  %832 = vst.msk [vmem:[%s831] sm:$0xff] %vm184, %v829
  %s833 = scalar_lea.vmem [#allocation2], 48
  %v834 = vld [vmem:[%s833] sm:$0xff]
  %v835 = vld [vmem:[%s2] sm:$0xff]
  %v836 = vld [vmem:[%s2 + $0x8] sm:$0xff]
  %v837 = vld [vmem:[%s2 + $0x10] sm:$0xff]
  %v838 = vld [vmem:[%s2 + $0x18] sm:$0xff]
  %v839 = vsel %vm184, %v829, 0
  %841 = vmatprep.subr.mxu0 0.0
  %842 = vmatpush1.msra.mxu0 0.0
  %843 = vmatprep.subr.mxu0 0.0
  %844 = vmatpush1.msra.mxu0 0.0
  %845 = vmatprep.subr.mxu0 0.0
  %846 = vmatpush1.msra.mxu0 0.0
  %847 = vmatprep.subr.mxu0 0.0
  %848 = vmatpush1.msra.mxu0 0.0
  %849 = vmatprep.subr.mxu0 0.0
  %850 = vmatpush1.msra.mxu0 0.0
  %851 = vmatprep.subr.mxu0 0.0
  %852 = vmatpush1.msra.mxu0 0.0
  %853 = vmatprep.subr.mxu0 0.0
  %854 = vmatpush1.msra.mxu0 0.0
  %855 = vmatprep.subr.mxu0 0.0
  %856 = vmatpush1.msra.mxu0 0.0
  %857 = vmatprep.subr.mxu0 0.0
  %858 = vmatpush1.msra.mxu0 0.0
  %859 = vmatprep.subr.mxu0 0.0
  %860 = vmatpush1.msra.mxu0 0.0
  %861 = vmatprep.subr.mxu0 0.0
  %862 = vmatpush1.msra.mxu0 0.0
  %863 = vmatprep.subr.mxu0 0.0
  %864 = vmatpush1.msra.mxu0 0.0
  %865 = vmatprep.subr.mxu0 0.0
  %866 = vmatpush1.msra.mxu0 %v838
  %867 = vmatprep.subr.mxu0 0.0
  %868 = vmatpush1.msra.mxu0 %v837
  %869 = vmatprep.subr.mxu0 0.0
  %870 = vmatpush1.msra.mxu0 %v836
  %871 = vmatprep.subr.mxu0 0.0
  %872 = vmatpush1.msra.mxu0 %v835
  %873 = vmatprep.subr.mxu0 0.0
  %874 = vmatpush2.msra.mxu0 0.0
  %875 = vmatprep.subr.mxu0 0.0
  %876 = vmatpush2.msra.mxu0 0.0
  %877 = vmatprep.subr.mxu0 0.0
  %878 = vmatpush2.msra.mxu0 0.0
  %879 = vmatprep.subr.mxu0 0.0
  %880 = vmatpush2.msra.mxu0 0.0
  %881 = vmatprep.subr.mxu0 0.0
  %882 = vmatpush2.msra.mxu0 0.0
  %883 = vmatprep.subr.mxu0 0.0
  %884 = vmatpush2.msra.mxu0 0.0
  %885 = vmatprep.subr.mxu0 0.0
  %886 = vmatpush2.msra.mxu0 0.0
  %887 = vmatprep.subr.mxu0 0.0
  %888 = vmatpush2.msra.mxu0 0.0
  %889 = vmatprep.subr.mxu0 0.0
  %890 = vmatpush2.msra.mxu0 0.0
  %891 = vmatprep.subr.mxu0 0.0
  %892 = vmatpush2.msra.mxu0 0.0
  %893 = vmatprep.subr.mxu0 0.0
  %894 = vmatpush2.msra.mxu0 0.0
  %895 = vmatprep.subr.mxu0 0.0
  %896 = vmatpush2.msra.mxu0 0.0
  %897 = vmatprep.subr.mxu0 0.0
  %898 = vmatpush2.msra.mxu0 0.0
  %899 = vmatprep.subr.mxu0 0.0
  %900 = vmatpush2.msra.mxu0 0.0
  %901 = vmatprep.subr.mxu0 0.0
  %902 = vmatpush2.msra.mxu0 0.0
  %903 = vmatprep.subr.mxu0 0.0
  %904 = vmatpush2.msra.mxu0 0.0
  %905 = vmatprep.mubr.f32.mxu0 0.0
  %906 = vmatmul.mubr.f32.gmra.mxu0 %v839
  %v907 = vpop.f32.mrf.mxu0
  %v908 = vadd.f32 0.0, %v907
  %v909 = vpop.f32.mrf.mxu0
  %910 = vdwg.mxu0
  %v911 = vadd.f32 %v834, %v908
  %v912 = vxor.u32 %v911, 2147483648
  %v913 = vmul.f32 %v912, 1.442695
  %v914 = vpow.pop %v913
  %v915 = vadd.f32 %v914, 1.0
  %v916 = vrcp.pop %v915
  %v917 = vmul.f32 1.0, %v916
  %v918 = vtanh.pop %v911
  %v919 = vmul.f32 %v917, %v820
  %921 = vrot.lane.b32.xlu0 %v918, 32
  %v922 = vpop.permute.xlu0 %921
  %v924 = vmul.f32 %v917, %v922
  %926 = vrot.lane.b32.xlu0 %v924, 32
  %v927 = vpop.permute.xlu0 %926
  %v929 = vadd.f32 %v919, %v927
  %v930 = vtanh.pop %v929
  %932 = vrot.lane.b32.xlu0 %v930, 32
  %v933 = vpop.permute.xlu0 %932
  %v935 = vmul.f32 %v917, %v933
  %937 = vrot.lane.b32.xlu0 %v935, 64
  %v938 = vpop.permute.xlu0 %937
  %s940 = scalar_lea.vmem [#allocation3], 48
  %941 = vst.msk [vmem:[%s940] sm:$0xff] %vm184, %v938
  %s942 = scalar_lea.vmem [#allocation2], 56
  %v943 = vld [vmem:[%s942] sm:$0xff]
  %v944 = vld [vmem:[%s2] sm:$0xff]
  %v945 = vld [vmem:[%s2 + $0x8] sm:$0xff]
  %v946 = vld [vmem:[%s2 + $0x10] sm:$0xff]
  %v947 = vld [vmem:[%s2 + $0x18] sm:$0xff]
  %v948 = vsel %vm184, %v938, 0
  %950 = vmatprep.subr.mxu0 0.0
  %951 = vmatpush1.msra.mxu0 0.0
  %952 = vmatprep.subr.mxu0 0.0
  %953 = vmatpush1.msra.mxu0 0.0
  %954 = vmatprep.subr.mxu0 0.0
  %955 = vmatpush1.msra.mxu0 0.0
  %956 = vmatprep.subr.mxu0 0.0
  %957 = vmatpush1.msra.mxu0 0.0
  %958 = vmatprep.subr.mxu0 0.0
  %959 = vmatpush1.msra.mxu0 0.0
  %960 = vmatprep.subr.mxu0 0.0
  %961 = vmatpush1.msra.mxu0 0.0
  %962 = vmatprep.subr.mxu0 0.0
  %963 = vmatpush1.msra.mxu0 0.0
  %964 = vmatprep.subr.mxu0 0.0
  %965 = vmatpush1.msra.mxu0 0.0
  %966 = vmatprep.subr.mxu0 0.0
  %967 = vmatpush1.msra.mxu0 0.0
  %968 = vmatprep.subr.mxu0 0.0
  %969 = vmatpush1.msra.mxu0 0.0
  %970 = vmatprep.subr.mxu0 0.0
  %971 = vmatpush1.msra.mxu0 0.0
  %972 = vmatprep.subr.mxu0 0.0
  %973 = vmatpush1.msra.mxu0 0.0
  %974 = vmatprep.subr.mxu0 0.0
  %975 = vmatpush1.msra.mxu0 %v947
  %976 = vmatprep.subr.mxu0 0.0
  %977 = vmatpush1.msra.mxu0 %v946
  %978 = vmatprep.subr.mxu0 0.0
  %979 = vmatpush1.msra.mxu0 %v945
  %980 = vmatprep.subr.mxu0 0.0
  %981 = vmatpush1.msra.mxu0 %v944
  %982 = vmatprep.subr.mxu0 0.0
  %983 = vmatpush2.msra.mxu0 0.0
  %984 = vmatprep.subr.mxu0 0.0
  %985 = vmatpush2.msra.mxu0 0.0
  %986 = vmatprep.subr.mxu0 0.0
  %987 = vmatpush2.msra.mxu0 0.0
  %988 = vmatprep.subr.mxu0 0.0
  %989 = vmatpush2.msra.mxu0 0.0
  %990 = vmatprep.subr.mxu0 0.0
  %991 = vmatpush2.msra.mxu0 0.0
  %992 = vmatprep.subr.mxu0 0.0
  %993 = vmatpush2.msra.mxu0 0.0
  %994 = vmatprep.subr.mxu0 0.0
  %995 = vmatpush2.msra.mxu0 0.0
  %996 = vmatprep.subr.mxu0 0.0
  %997 = vmatpush2.msra.mxu0 0.0
  %998 = vmatprep.subr.mxu0 0.0
  %999 = vmatpush2.msra.mxu0 0.0
  %1000 = vmatprep.subr.mxu0 0.0
  %1001 = vmatpush2.msra.mxu0 0.0
  %1002 = vmatprep.subr.mxu0 0.0
  %1003 = vmatpush2.msra.mxu0 0.0
  %1004 = vmatprep.subr.mxu0 0.0
  %1005 = vmatpush2.msra.mxu0 0.0
  %1006 = vmatprep.subr.mxu0 0.0
  %1007 = vmatpush2.msra.mxu0 0.0
  %1008 = vmatprep.subr.mxu0 0.0
  %1009 = vmatpush2.msra.mxu0 0.0
  %1010 = vmatprep.subr.mxu0 0.0
  %1011 = vmatpush2.msra.mxu0 0.0
  %1012 = vmatprep.subr.mxu0 0.0
  %1013 = vmatpush2.msra.mxu0 0.0
  %1014 = vmatprep.mubr.f32.mxu0 0.0
  %1015 = vmatmul.mubr.f32.gmra.mxu0 %v948
  %v1016 = vpop.f32.mrf.mxu0
  %v1017 = vadd.f32 0.0, %v1016
  %v1018 = vpop.f32.mrf.mxu0
  %1019 = vdwg.mxu0
  %v1020 = vadd.f32 %v943, %v1017
  %v1021 = vxor.u32 %v1020, 2147483648
  %v1022 = vmul.f32 %v1021, 1.442695
  %v1023 = vpow.pop %v1022
  %v1024 = vadd.f32 %v1023, 1.0
  %v1025 = vrcp.pop %v1024
  %v1026 = vmul.f32 1.0, %v1025
  %v1027 = vtanh.pop %v1020
  %v1028 = vmul.f32 %v1026, %v929
  %1030 = vrot.lane.b32.xlu0 %v1027, 32
  %v1031 = vpop.permute.xlu0 %1030
  %v1033 = vmul.f32 %v1026, %v1031
  %1035 = vrot.lane.b32.xlu0 %v1033, 32
  %v1036 = vpop.permute.xlu0 %1035
  %v1038 = vadd.f32 %v1028, %v1036
  %v1039 = vtanh.pop %v1038
  %1041 = vrot.lane.b32.xlu0 %v1039, 32
  %v1042 = vpop.permute.xlu0 %1041
  %v1044 = vmul.f32 %v1026, %v1042
  %1046 = vrot.lane.b32.xlu0 %v1044, 64
  %v1047 = vpop.permute.xlu0 %1046
  %s1049 = scalar_lea.vmem [#allocation3], 56
  %1050 = vst.msk [vmem:[%s1049] sm:$0xff] %vm184, %v1047
  %v1051 = vld [vmem:[#allocation3] sm:$0xff]
  %v1052 = vld [vmem:[#allocation3 + $0x8] sm:$0xff]
  %v1053 = vld [vmem:[#allocation3 + $0x10] sm:$0xff]
  %v1054 = vld [vmem:[#allocation3 + $0x18] sm:$0xff]
  %v1055 = vld [vmem:[#allocation3 + $0x20] sm:$0xff]
  %v1056 = vld [vmem:[#allocation3 + $0x28] sm:$0xff]
  %v1057 = vld [vmem:[#allocation3 + $0x30] sm:$0xff]
  %v1058 = vld [vmem:[#allocation3 + $0x38] sm:$0xff]
  %v1059 = vld [vmem:[%s4] sm:$0x1]
  %v1061 = vlaneseq
  %v1062 = vshrl.u32 %v1061, 7
  %v1063 = vsub.s32 0, %v1062
  %v1064 = vrot.slane %v1059, %v1063
  %v1066 = vmul.f32 %v1051, %v1064
  %v1067 = vmul.f32 %v1052, %v1064
  %v1068 = vmul.f32 %v1053, %v1064
  %v1069 = vmul.f32 %v1054, %v1064
  %v1070 = vmul.f32 %v1055, %v1064
  %v1071 = vmul.f32 %v1056, %v1064
  %v1072 = vmul.f32 %v1057, %v1064
  %v1073 = vmul.f32 %v1058, %v1064
  %v1074 = vsel %vm184, %v1066, 0.0
  %1075 = vadd.xlane.f32.xlu0 %v1074
  %v1076 = vpop.xlane.xlu0 %1075
  %v1077 = vsel %vm184, %v1067, 0.0
  %1078 = vadd.xlane.f32.xlu0 %v1077
  %v1079 = vpop.xlane.xlu0 %1078
  %v1080 = vsel %vm184, %v1068, 0.0
  %1081 = vadd.xlane.f32.xlu0 %v1080
  %v1082 = vpop.xlane.xlu0 %1081
  %v1083 = vsel %vm184, %v1069, 0.0
  %1084 = vadd.xlane.f32.xlu0 %v1083
  %v1085 = vpop.xlane.xlu0 %1084
  %v1086 = vsel %vm184, %v1070, 0.0
  %1087 = vadd.xlane.f32.xlu0 %v1086
  %v1088 = vpop.xlane.xlu0 %1087
  %v1089 = vsel %vm184, %v1071, 0.0
  %1090 = vadd.xlane.f32.xlu0 %v1089
  %v1091 = vpop.xlane.xlu0 %1090
  %v1092 = vsel %vm184, %v1072, 0.0
  %1093 = vadd.xlane.f32.xlu0 %v1092
  %v1094 = vpop.xlane.xlu0 %1093
  %v1095 = vsel %vm184, %v1073, 0.0
  %1096 = vadd.xlane.f32.xlu0 %v1095
  %v1097 = vpop.xlane.xlu0 %1096
  %v1098 = vld [vmem:[#allocation4] sm:$0x1]
  %v1100 = vlaneseq
  %v1101 = vshrl.u32 %v1100, 7
  %v1102 = vsub.s32 0, %v1101
  %v1103 = vrot.slane %v1098, %v1102
  %v1105 = vadd.f32 %v1076, %v1103
  %v1106 = vadd.f32 %v1079, %v1103
  %v1107 = vadd.f32 %v1082, %v1103
  %v1108 = vadd.f32 %v1085, %v1103
  %v1109 = vadd.f32 %v1088, %v1103
  %v1110 = vadd.f32 %v1091, %v1103
  %v1111 = vadd.f32 %v1094, %v1103
  %v1112 = vadd.f32 %v1097, %v1103
  %v1113 = vlaneseq
  %v1114 = vand.u32 %v1113, 127
  %vm1115 = vcmp.eq.s32.totalorder %v1114, 0
  %v1116 = vsel %vm1115, 1.0, -1.0
  %1118 = vset.pattern.permute.xlu0 0
  %1119 = vperm.xlu0 %1118, %v1105
  %v1120 = vpop.permute.xlu0 %1119
  %1123 = vset.pattern.permute.xlu0 0
  %1124 = vperm.xlu0 %1123, %v1106
  %v1125 = vpop.permute.xlu0 %1124
  %1128 = vset.pattern.permute.xlu0 0
  %1129 = vperm.xlu0 %1128, %v1107
  %v1130 = vpop.permute.xlu0 %1129
  %1133 = vset.pattern.permute.xlu0 0
  %1134 = vperm.xlu0 %1133, %v1108
  %v1135 = vpop.permute.xlu0 %1134
  %1138 = vset.pattern.permute.xlu0 0
  %1139 = vperm.xlu0 %1138, %v1109
  %v1140 = vpop.permute.xlu0 %1139
  %1143 = vset.pattern.permute.xlu0 0
  %1144 = vperm.xlu0 %1143, %v1110
  %v1145 = vpop.permute.xlu0 %1144
  %1148 = vset.pattern.permute.xlu0 0
  %1149 = vperm.xlu0 %1148, %v1111
  %v1150 = vpop.permute.xlu0 %1149
  %1153 = vset.pattern.permute.xlu0 0
  %1154 = vperm.xlu0 %1153, %v1112
  %v1155 = vpop.permute.xlu0 %1154
  %v1157 = vmul.f32 %v1120, %v1116
  %v1158 = vmul.f32 %v1125, %v1116
  %v1159 = vmul.f32 %v1130, %v1116
  %v1160 = vmul.f32 %v1135, %v1116
  %v1161 = vmul.f32 %v1140, %v1116
  %v1162 = vmul.f32 %v1145, %v1116
  %v1163 = vmul.f32 %v1150, %v1116
  %v1164 = vmul.f32 %v1155, %v1116
  %v1165 = vmax.f32 %v1157, 0.0
  %v1166 = vmax.f32 %v1158, 0.0
  %v1167 = vmax.f32 %v1159, 0.0
  %v1168 = vmax.f32 %v1160, 0.0
  %v1169 = vmax.f32 %v1161, 0.0
  %v1170 = vmax.f32 %v1162, 0.0
  %v1171 = vmax.f32 %v1163, 0.0
  %v1172 = vmax.f32 %v1164, 0.0
  %vm1173 = vcmp.ne.f32.partialorder %v1157, %v1157
  %vm1174 = vcmp.ne.f32.partialorder %v1158, %v1158
  %vm1175 = vcmp.ne.f32.partialorder %v1159, %v1159
  %vm1176 = vcmp.ne.f32.partialorder %v1160, %v1160
  %vm1177 = vcmp.ne.f32.partialorder %v1161, %v1161
  %vm1178 = vcmp.ne.f32.partialorder %v1162, %v1162
  %vm1179 = vcmp.ne.f32.partialorder %v1163, %v1163
  %vm1180 = vcmp.ne.f32.partialorder %v1164, %v1164
  %v1181 = vadd.f32 %v1157, 0.0
  %v1182 = vadd.f32 %v1158, 0.0
  %v1183 = vadd.f32 %v1159, 0.0
  %v1184 = vadd.f32 %v1160, 0.0
  %v1185 = vadd.f32 %v1161, 0.0
  %v1186 = vadd.f32 %v1162, 0.0
  %v1187 = vadd.f32 %v1163, 0.0
  %v1188 = vadd.f32 %v1164, 0.0
  %v1189 = vand.u32 2147483647, %v1157
  %v1190 = vand.u32 2147483647, %v1158
  %v1191 = vand.u32 2147483647, %v1159
  %v1192 = vand.u32 2147483647, %v1160
  %v1193 = vand.u32 2147483647, %v1161
  %v1194 = vand.u32 2147483647, %v1162
  %v1195 = vand.u32 2147483647, %v1163
  %v1196 = vand.u32 2147483647, %v1164
  %v1197 = vsub.f32 0.0, %v1189
  %v1198 = vsub.f32 0.0, %v1190
  %v1199 = vsub.f32 0.0, %v1191
  %v1200 = vsub.f32 0.0, %v1192
  %v1201 = vsub.f32 0.0, %v1193
  %v1202 = vsub.f32 0.0, %v1194
  %v1203 = vsub.f32 0.0, %v1195
  %v1204 = vsub.f32 0.0, %v1196
  %v1205 = vmul.f32 %v1197, 1.442695
  %v1206 = vpow.pop %v1205
  %v1207 = vmul.f32 %v1198, 1.442695
  %v1208 = vpow.pop %v1207
  %v1209 = vmul.f32 %v1199, 1.442695
  %v1210 = vpow.pop %v1209
  %v1211 = vmul.f32 %v1200, 1.442695
  %v1212 = vpow.pop %v1211
  %v1213 = vmul.f32 %v1201, 1.442695
  %v1214 = vpow.pop %v1213
  %v1215 = vmul.f32 %v1202, 1.442695
  %v1216 = vpow.pop %v1215
  %v1217 = vmul.f32 %v1203, 1.442695
  %v1218 = vpow.pop %v1217
  %v1219 = vmul.f32 %v1204, 1.442695
  %v1220 = vpow.pop %v1219
  %v1221 = vadd.f32 %v1206, 1.0
  %v1222 = vlog2.pop %v1221
  %v1223 = vmul.f32 %v1222, 0.6931472
  %v1224 = vmul.f32 -0.5, %v1206
  %v1225 = vadd.f32 %v1224, 1.0
  %v1226 = vmul.f32 %v1225, %v1206
  %v1227 = vand.u32 2147483647, %v1206
  %vm1228 = vcmp.lt.f32.partialorder %v1227, 0.0004427343
  %v1229 = vsel %vm1228, %v1226, %v1223
  %v1230 = vadd.f32 %v1208, 1.0
  %v1231 = vlog2.pop %v1230
  %v1232 = vmul.f32 %v1231, 0.6931472
  %v1233 = vmul.f32 -0.5, %v1208
  %v1234 = vadd.f32 %v1233, 1.0
  %v1235 = vmul.f32 %v1234, %v1208
  %v1236 = vand.u32 2147483647, %v1208
  %vm1237 = vcmp.lt.f32.partialorder %v1236, 0.0004427343
  %v1238 = vsel %vm1237, %v1235, %v1232
  %v1239 = vadd.f32 %v1210, 1.0
  %v1240 = vlog2.pop %v1239
  %v1241 = vmul.f32 %v1240, 0.6931472
  %v1242 = vmul.f32 -0.5, %v1210
  %v1243 = vadd.f32 %v1242, 1.0
  %v1244 = vmul.f32 %v1243, %v1210
  %v1245 = vand.u32 2147483647, %v1210
  %vm1246 = vcmp.lt.f32.partialorder %v1245, 0.0004427343
  %v1247 = vsel %vm1246, %v1244, %v1241
  %v1248 = vadd.f32 %v1212, 1.0
  %v1249 = vlog2.pop %v1248
  %v1250 = vmul.f32 %v1249, 0.6931472
  %v1251 = vmul.f32 -0.5, %v1212
  %v1252 = vadd.f32 %v1251, 1.0
  %v1253 = vmul.f32 %v1252, %v1212
  %v1254 = vand.u32 2147483647, %v1212
  %vm1255 = vcmp.lt.f32.partialorder %v1254, 0.0004427343
  %v1256 = vsel %vm1255, %v1253, %v1250
  %v1257 = vadd.f32 %v1214, 1.0
  %v1258 = vlog2.pop %v1257
  %v1259 = vmul.f32 %v1258, 0.6931472
  %v1260 = vmul.f32 -0.5, %v1214
  %v1261 = vadd.f32 %v1260, 1.0
  %v1262 = vmul.f32 %v1261, %v1214
  %v1263 = vand.u32 2147483647, %v1214
  %vm1264 = vcmp.lt.f32.partialorder %v1263, 0.0004427343
  %v1265 = vsel %vm1264, %v1262, %v1259
  %v1266 = vadd.f32 %v1216, 1.0
  %v1267 = vlog2.pop %v1266
  %v1268 = vmul.f32 %v1267, 0.6931472
  %v1269 = vmul.f32 -0.5, %v1216
  %v1270 = vadd.f32 %v1269, 1.0
  %v1271 = vmul.f32 %v1270, %v1216
  %v1272 = vand.u32 2147483647, %v1216
  %vm1273 = vcmp.lt.f32.partialorder %v1272, 0.0004427343
  %v1274 = vsel %vm1273, %v1271, %v1268
  %v1275 = vadd.f32 %v1218, 1.0
  %v1276 = vlog2.pop %v1275
  %v1277 = vmul.f32 %v1276, 0.6931472
  %v1278 = vmul.f32 -0.5, %v1218
  %v1279 = vadd.f32 %v1278, 1.0
  %v1280 = vmul.f32 %v1279, %v1218
  %v1281 = vand.u32 2147483647, %v1218
  %vm1282 = vcmp.lt.f32.partialorder %v1281, 0.0004427343
  %v1283 = vsel %vm1282, %v1280, %v1277
  %v1284 = vadd.f32 %v1220, 1.0
  %v1285 = vlog2.pop %v1284
  %v1286 = vmul.f32 %v1285, 0.6931472
  %v1287 = vmul.f32 -0.5, %v1220
  %v1288 = vadd.f32 %v1287, 1.0
  %v1289 = vmul.f32 %v1288, %v1220
  %v1290 = vand.u32 2147483647, %v1220
  %vm1291 = vcmp.lt.f32.partialorder %v1290, 0.0004427343
  %v1292 = vsel %vm1291, %v1289, %v1286
  %v1293 = vadd.f32 %v1165, %v1229
  %v1294 = vadd.f32 %v1166, %v1238
  %v1295 = vadd.f32 %v1167, %v1247
  %v1296 = vadd.f32 %v1168, %v1256
  %v1297 = vadd.f32 %v1169, %v1265
  %v1298 = vadd.f32 %v1170, %v1274
  %v1299 = vadd.f32 %v1171, %v1283
  %v1300 = vadd.f32 %v1172, %v1292
  %v1301 = vsel %vm1173, %v1181, %v1293
  %v1302 = vsel %vm1174, %v1182, %v1294
  %v1303 = vsel %vm1175, %v1183, %v1295
  %v1304 = vsel %vm1176, %v1184, %v1296
  %v1305 = vsel %vm1177, %v1185, %v1297
  %v1306 = vsel %vm1178, %v1186, %v1298
  %v1307 = vsel %vm1179, %v1187, %v1299
  %v1308 = vsel %vm1180, %v1188, %v1300
  %v1309 = vsub.f32 0.0, %v1301
  %v1310 = vsub.f32 0.0, %v1302
  %v1311 = vsub.f32 0.0, %v1303
  %v1312 = vsub.f32 0.0, %v1304
  %v1313 = vsub.f32 0.0, %v1305
  %v1314 = vsub.f32 0.0, %v1306
  %v1315 = vsub.f32 0.0, %v1307
  %v1316 = vsub.f32 0.0, %v1308
  %1317 = vst [vmem:[%s6] sm:$0xff] %v1309
  %1318 = vst [vmem:[%s6 + $0x8] sm:$0xff] %v1310
  %1319 = vst [vmem:[%s6 + $0x10] sm:$0xff] %v1311
  %1320 = vst [vmem:[%s6 + $0x18] sm:$0xff] %v1312
  %1321 = vst [vmem:[%s6 + $0x20] sm:$0xff] %v1313
  %1322 = vst [vmem:[%s6 + $0x28] sm:$0xff] %v1314
  %1323 = vst [vmem:[%s6 + $0x30] sm:$0xff] %v1315
  %1324 = vst [vmem:[%s6 + $0x38] sm:$0xff] %v1316
  // Predicated region
  $region26: #{lstm_tagger_forward.1} parent=0 // pred_check
    _
  $region27: #{lstm_tagger_forward.1} parent=0 // pred_check_branch
    %1326 = sbr.rel (0) target = $region29
  $region28: #{lstm_tagger_forward.1} parent=0 // pred_region
    _
  $region29: #{lstm_tagger_forward.1} parent=0 // pred_fallthru
    _
  // Predicated region
  $region30: #{lstm_tagger_forward.1} parent=0 // pred_check
    _
  $region31: #{lstm_tagger_forward.1} parent=0 // pred_check_branch
    %1328 = sbr.rel (0) target = $region33
  $region32: #{lstm_tagger_forward.1} parent=0 // pred_region
    _
  $region33: #{lstm_tagger_forward.1} parent=0 // pred_fallthru
    _

</llo_original>
